<compile_context>
chip_gen: v7x
topology: tpu7x:2x2x1
jax: 0.10.0
libtpu: 0.0.40
codegen_flags: <defaults>
</compile_context>

<pallas_src>
import functools

import jax
import jax.numpy as jnp
from jax import lax
from jax.experimental import pallas as pl
from jax.experimental.pallas import tpu as pltpu


def _vmem_capacity_bytes():
    """Physical VMEM of the attached TPU generation (fallback: 128 MiB)."""
    try:
        cap = getattr(pltpu.get_tpu_info(), "vmem_capacity_bytes", None)
        if cap:
            return int(cap)
    except Exception:
        pass
    return 128 << 20


def _block_bytes(nb, cb, hw, l_flat, in_item, out_item):
    """VMEM footprint of one grid step (double-buffered I/O + all scratch)."""
    return (2 * nb * cb * hw * in_item      # x block, double-buffered, native dtype
            + 2 * nb * 1 * hw * out_item    # output block, double-buffered
            + 2 * nb * l_flat * 4           # stacked [avg, max] feature scratch (f32)
            + 2 * nb * hw * 4)              # running sum + running max scratch (f32)


def _pick_blocks(n, c, hw, l_flat, in_item, out_item, budget):
    """Pick (Nb, Cb): fit the budget, prefer >=2 batch grid steps, then the
    largest channel block (fewest reduction steps), then the largest Nb."""
    c_cands = [d for d in range(c, 0, -1)
               if c % d == 0 and (d == c or d % 8 == 0)]
    n_cands = [d for d in range(n, 0, -1) if n % d == 0]
    best_key, best = None, None
    for cb in c_cands:
        for nb in n_cands:
            need = _block_bytes(nb, cb, hw, l_flat, in_item, out_item)
            fits = need <= budget
            n_multi = (n // nb >= 2) or (n == 1)
            key = (fits, n_multi, cb, nb)
            if best_key is None or key > best_key:
                best_key, best = key, (nb, cb)
    if not best_key[0]:
        best = (1, min(c_cands))          # smallest footprint we can express
    return best


def _loop(n_iters, body, static_limit=8):
    """Static Python loop for short trip counts, lax.fori_loop otherwise
    (bounds live ranges for long loops)."""
    if n_iters <= static_limit:
        for i in range(n_iters):
            body(i)
    else:
        def wrapped(i, carry):
            body(i)
            return carry
        lax.fori_loop(0, n_iters, wrapped, 0)


def _offset(i, block):
    off = i * block
    if isinstance(off, int):
        return off
    return pl.multiple_of(off, block)


def _make_kernel(Nb, Cb, C, H, W, K, base, L):
    """Kernel closure for static (Nb, Cb, C, H, W, K) and layout constants."""
    HW = H * W
    pad = K // 2
    CH = max(d for d in (8, 4, 2, 1) if Cb % d == 0)   # sublane-aligned chunk
    n_ch = Cb // CH
    RB = 8 if Nb % 8 == 0 else Nb                      # conv row sub-chunk
    n_rb = Nb // RB

    def kernel(x_ref, w_ref, o_ref, fp_ref, sum_ref, max_ref):
        # x_ref  : (Nb, Cb, HW)  input block, spatial flattened onto lanes
        # w_ref  : SMEM (2*K*K,) flattened conv weight, layout [c, kh, kw]
        # o_ref  : (Nb, 1, HW)   sigmoid(conv2d(cat[avg, max])), lane-dense
        # fp_ref : VMEM (2, Nb, L) f32: zero slack + flattened feature planes
        # sum_ref, max_ref: VMEM (Nb, HW) f32 running channel sum / max
        c_idx = pl.program_id(1)

        @pl.when(c_idx == 0)
        def _init():
            sum_ref[...] = jnp.zeros((Nb, HW), jnp.float32)
            max_ref[...] = jnp.full((Nb, HW), -jnp.inf, jnp.float32)

        # Single streamed pass over this channel block: running sum and max
        # are updated from the same loaded chunk (one traversal, no f32 copy
        # of the whole block).
        def chan_body(i):
            c0 = _offset(i, CH)
            xc = x_ref[:, pl.ds(c0, CH), :].astype(jnp.float32)  # (Nb, CH, HW)
            sum_ref[...] = sum_ref[...] + jnp.sum(xc, axis=1)
            max_ref[...] = jnp.maximum(max_ref[...], jnp.max(xc, axis=1))

        _loop(n_ch, chan_body)

        @pl.when(c_idx == pl.num_programs(1) - 1)
        def _finalize():
            # Zero only the slack lane ranges; the data region is fully
            # overwritten below.  Re-done every finalize on purpose: under
            # megacore sharding each core owns a private scratch, so a
            # program_id==0 one-time init would leave one core dirty.
            fp_ref[:, :, :base] = jnp.zeros((2, Nb, base), jnp.float32)
            fp_ref[:, :, base + HW:] = jnp.zeros((2, Nb, base), jnp.float32)
            fp_ref[0, :, base:base + HW] = sum_ref[...] * (1.0 / C)   # avg plane
            fp_ref[1, :, base:base + HW] = max_ref[...]               # max plane

            # Output column (flat position mod W) for the horizontal masks.
            col = lax.broadcasted_iota(jnp.int32, (1, HW), 1) % W

            def row_body(r):
                r0 = _offset(r, RB)
                acc = jnp.zeros((RB, HW), jnp.float32)
                # Fully unrolled taps: K, W, base are Python ints -> static
                # lane offsets.  The zero slack reproduces vertical padding;
                # the per-kw column mask reproduces horizontal padding.
                for kw in range(K):
                    dc = kw - pad
                    inner = jnp.zeros((RB, HW), jnp.float32)
                    for kh in range(K):
                        q0 = base + (kh - pad) * W + dc
                        w_avg = w_ref[kh * K + kw]
                        w_max = w_ref[K * K + kh * K + kw]
                        inner = (inner
                                 + fp_ref[0, pl.ds(r0, RB), pl.ds(q0, HW)] * w_avg
                                 + fp_ref[1, pl.ds(r0, RB), pl.ds(q0, HW)] * w_max)
                    if dc == 0:
                        acc = acc + inner
                    else:
                        valid = jnp.logical_and(col + dc >= 0, col + dc < W)
                        # Select (not multiply): no NaN leak if wrapped lanes
                        # carry +/-inf from the max plane.
                        acc = acc + jnp.where(valid, inner, 0.0)
                o_ref[pl.ds(r0, RB), :, :] = (
                    jax.nn.sigmoid(acc)[:, None, :].astype(o_ref.dtype))

            _loop(n_rb, row_body)

    return kernel


@functools.partial(jax.jit, static_argnames=("kernel_size", "block_override"))
def spatial_attention(x, conv_weight, kernel_size=7, block_override=None):
    """x: (N, C, H, W). conv_weight: (1, 2, K, K), no bias.

    Returns sigmoid(conv2d(cat[mean_c(x), max_c(x)], W)) of shape (N, 1, H, W).
    """
    N, C, H, W = x.shape
    K = kernel_size
    pad = K // 2
    HW = H * W

    # Layout glue only (no compute, no extra HBM pass): flatten spatial into
    # the lane axis so every in-kernel op and the output store are lane-dense.
    xf = x.reshape(N, C, HW)
    w_flat = conv_weight.reshape(-1).astype(jnp.float32)        # (2*K*K,)

    slack = pad * (W + 1)                   # zero slack needed on each side
    base = ((slack + 127) // 128) * 128     # lane-aligned zero prefix
    L = base + HW + base                    # flat scratch lane length

    itemsize = x.dtype.itemsize
    physical = _vmem_capacity_bytes()
    budget = physical // 2                  # ~64 MiB v5e/v6e, ~32 MiB v7x

    if block_override is not None:
        Nb, Cb = block_override
        assert N % Nb == 0 and C % Cb == 0 and (Cb == C or Cb % 8 == 0)
    else:
        Nb, Cb = _pick_blocks(N, C, HW, L, itemsize, itemsize, budget)

    need = _block_bytes(Nb, Cb, HW, L, itemsize, itemsize)
    vmem_limit = int(min(int(physical * 0.9), max(budget, need + (4 << 20))))

    kernel = _make_kernel(Nb, Cb, C, H, W, K, base, L)

    out_flat = pl.pallas_call(
        kernel,
        out_shape=jax.ShapeDtypeStruct((N, 1, HW), x.dtype),
        grid=(N // Nb, C // Cb),            # reduction (channel) axis last
        in_specs=[
            pl.BlockSpec((Nb, Cb, HW), lambda n, c: (n, c, 0)),
            pl.BlockSpec(memory_space=pltpu.MemorySpace.SMEM),
        ],
        out_specs=pl.BlockSpec((Nb, 1, HW), lambda n, c: (n, 0, 0)),
        scratch_shapes=[
            pltpu.VMEM((2, Nb, L), jnp.float32),    # [avg, max] padded planes
            pltpu.VMEM((Nb, HW), jnp.float32),      # running channel sum
            pltpu.VMEM((Nb, HW), jnp.float32),      # running channel max
        ],
        compiler_params=pltpu.CompilerParams(
            dimension_semantics=("parallel", "arbitrary"),
            vmem_limit_bytes=vmem_limit),
    )(xf, w_flat)

    return out_flat.reshape(N, 1, H, W)


def _reference(x, conv_weight, kernel_size=7):
    """Plain-JAX reference reproducing the PyTorch forward."""
    avg = jnp.mean(x, axis=1, keepdims=True)
    mx = jnp.max(x, axis=1, keepdims=True)
    feat = jnp.concatenate([avg, mx], axis=1)                   # (N, 2, H, W)
    pad = kernel_size // 2
    out = lax.conv_general_dilated(
        feat, conv_weight,
        window_strides=(1, 1),
        padding=((pad, pad), (pad, pad)),
        dimension_numbers=("NCHW", "OIHW", "NCHW"))
    return jax.nn.sigmoid(out)


if __name__ == "__main__":
    key = jax.random.PRNGKey(0)
    kx, kw, kx2, kw2 = jax.random.split(key, 4)

    K = 7
    fan_in = 2 * K * K

    # Primary check: the module-implied small shape.
    N, C, H, W = 2, 4, 16, 16
    x = jax.random.normal(kx, (N, C, H, W), dtype=jnp.float32)
    conv_weight = jax.random.normal(kw, (1, 2, K, K), dtype=jnp.float32) * (
        (2.0 / fan_in) ** 0.5)

    out = jax.block_until_ready(spatial_attention(x, conv_weight, kernel_size=K))
    ref = jax.block_until_ready(_reference(x, conv_weight, kernel_size=K))
    assert out.shape == (N, 1, H, W), out.shape
    assert jnp.allclose(out, ref, rtol=1e-5, atol=1e-5), (
        float(jnp.max(jnp.abs(out - ref))))

    # Secondary check: exercises the channel-split "arbitrary" grid axis and
    # the running sum/max accumulator path (grid = (2, 2)).
    N2, C2, H2, W2 = 2, 16, 8, 8
    x2 = jax.random.normal(kx2, (N2, C2, H2, W2), dtype=jnp.float32)
    conv_weight2 = jax.random.normal(kw2, (1, 2, K, K), dtype=jnp.float32) * (
        (2.0 / fan_in) ** 0.5)

    out2 = jax.block_until_ready(
        spatial_attention(x2, conv_weight2, kernel_size=K, block_override=(1, 8)))
    ref2 = jax.block_until_ready(_reference(x2, conv_weight2, kernel_size=K))
    assert out2.shape == (N2, 1, H2, W2), out2.shape
    assert jnp.allclose(out2, ref2, rtol=1e-5, atol=1e-5), (
        float(jnp.max(jnp.abs(out2 - ref2))))

    print("KERNEL_OK")
</pallas_src>

<mosaic_0001>
module attributes {stable_mosaic.version = 11 : i64} {
  func.func @kernel(%arg0: i32, %arg1: i32, %arg2: memref<1x4x256xf32, #tpu.memory_space<vmem>>, %arg3: memref<98xf32, #tpu.memory_space<smem>>, %arg4: memref<1x1x256xf32, #tpu.memory_space<vmem>>, %arg5: memref<2x1x512xf32, #tpu.memory_space<vmem>>, %arg6: memref<1x256xf32, #tpu.memory_space<vmem>>, %arg7: memref<1x256xf32, #tpu.memory_space<vmem>>) attributes {dimension_semantics = [#tpu.dimension_semantics<parallel>, #tpu.dimension_semantics<arbitrary>], iteration_bounds = array<i64: 2, 1>, scalar_prefetch = 0 : i64, scratch_operands = 3 : i64, tpu.core_type = #tpu.core_type<tc>, window_params = [{transform_indices = @transform_0, window_bounds = array<i64: 1, 4, 256>}, {transform_indices = @transform_1, window_bounds = array<i64: 98>}, {transform_indices = @transform_2, window_bounds = array<i64: 1, 1, 256>}]} {
    %c0_i32 = arith.constant 0 : i32
    %0 = arith.cmpi eq, %arg1, %c0_i32 : i32
    %1 = arith.extui %0 : i1 to i32
    %c0_i32_0 = arith.constant 0 : i32
    %2 = arith.cmpi ne, %1, %c0_i32_0 : i32
    scf.if %2 {
      %cst_14 = arith.constant 0.000000e+00 : f32
      %15 = vector.broadcast %cst_14 : f32 to vector<1x256xf32>
      %c0_15 = arith.constant 0 : index
      %c0_16 = arith.constant 0 : index
      %16 = vector.load %arg6[%c0_15, %c0_16] : memref<1x256xf32, #tpu.memory_space<vmem>>, vector<1x256xf32>
      tpu.vector_store %arg6[%c0_15, %c0_16], %15 {strides = array<i32>} : memref<1x256xf32, #tpu.memory_space<vmem>>, vector<1x256xf32>,
      %cst_17 = arith.constant 0xFF800000 : f32
      %17 = vector.broadcast %cst_17 : f32 to vector<1x256xf32>
      %c0_18 = arith.constant 0 : index
      %c0_19 = arith.constant 0 : index
      %18 = vector.load %arg7[%c0_18, %c0_19] : memref<1x256xf32, #tpu.memory_space<vmem>>, vector<1x256xf32>
      tpu.vector_store %arg7[%c0_18, %c0_19], %17 {strides = array<i32>} : memref<1x256xf32, #tpu.memory_space<vmem>>, vector<1x256xf32>,
    } else {
    }
    %c0 = arith.constant 0 : index
    %c0_1 = arith.constant 0 : index
    %c0_2 = arith.constant 0 : index
    %3 = vector.load %arg2[%c0, %c0_1, %c0_2] : memref<1x4x256xf32, #tpu.memory_space<vmem>>, vector<1x4x256xf32>
    %c0_3 = arith.constant 0 : index
    %c0_4 = arith.constant 0 : index
    %4 = vector.load %arg6[%c0_3, %c0_4] : memref<1x256xf32, #tpu.memory_space<vmem>>, vector<1x256xf32>
    %cst = arith.constant dense<0.000000e+00> : vector<1x256xf32>
    %5 = vector.multi_reduction <add>, %3, %cst [1] : vector<1x4x256xf32> to vector<1x256xf32>
    %6 = arith.addf %4, %5 : vector<1x256xf32>
    %c0_5 = arith.constant 0 : index
    %c0_6 = arith.constant 0 : index
    %7 = vector.load %arg6[%c0_5, %c0_6] : memref<1x256xf32, #tpu.memory_space<vmem>>, vector<1x256xf32>
    tpu.vector_store %arg6[%c0_5, %c0_6], %6 {strides = array<i32>} : memref<1x256xf32, #tpu.memory_space<vmem>>, vector<1x256xf32>,
    %c0_7 = arith.constant 0 : index
    %c0_8 = arith.constant 0 : index
    %8 = vector.load %arg7[%c0_7, %c0_8] : memref<1x256xf32, #tpu.memory_space<vmem>>, vector<1x256xf32>
    %cst_9 = arith.constant dense<0xFF800000> : vector<1x256xf32>
    %9 = vector.multi_reduction <maximumf>, %3, %cst_9 [1] : vector<1x4x256xf32> to vector<1x256xf32>
    %10 = arith.maximumf %8, %9 : vector<1x256xf32>
    %c0_10 = arith.constant 0 : index
    %c0_11 = arith.constant 0 : index
    %11 = vector.load %arg7[%c0_10, %c0_11] : memref<1x256xf32, #tpu.memory_space<vmem>>, vector<1x256xf32>
    tpu.vector_store %arg7[%c0_10, %c0_11], %10 {strides = array<i32>} : memref<1x256xf32, #tpu.memory_space<vmem>>, vector<1x256xf32>,
    %c0_i32_12 = arith.constant 0 : i32
    %12 = arith.cmpi eq, %arg1, %c0_i32_12 : i32
    %13 = arith.extui %12 : i1 to i32
    %c0_i32_13 = arith.constant 0 : i32
    %14 = arith.cmpi ne, %13, %c0_i32_13 : i32
    scf.if %14 {
      %cst_14 = arith.constant 0.000000e+00 : f32
      %15 = vector.broadcast %cst_14 : f32 to vector<2x1x128xf32>
      %c0_15 = arith.constant 0 : index
      %c0_16 = arith.constant 0 : index
      %c0_17 = arith.constant 0 : index
      %16 = vector.load %arg5[%c0_15, %c0_16, %c0_17] : memref<2x1x512xf32, #tpu.memory_space<vmem>>, vector<2x1x128xf32>
      tpu.vector_store %arg5[%c0_15, %c0_16, %c0_17], %15 {strides = array<i32>} : memref<2x1x512xf32, #tpu.memory_space<vmem>>, vector<2x1x128xf32>,
      %cst_18 = arith.constant 0.000000e+00 : f32
      %17 = vector.broadcast %cst_18 : f32 to vector<2x1x128xf32>
      %c0_19 = arith.constant 0 : index
      %c0_20 = arith.constant 0 : index
      %c384 = arith.constant 384 : index
      %18 = vector.load %arg5[%c0_19, %c0_20, %c384] : memref<2x1x512xf32, #tpu.memory_space<vmem>>, vector<2x1x128xf32>
      tpu.vector_store %arg5[%c0_19, %c0_20, %c384], %17 {strides = array<i32>} : memref<2x1x512xf32, #tpu.memory_space<vmem>>, vector<2x1x128xf32>,
      %c0_21 = arith.constant 0 : index
      %c0_22 = arith.constant 0 : index
      %19 = vector.load %arg6[%c0_21, %c0_22] : memref<1x256xf32, #tpu.memory_space<vmem>>, vector<1x256xf32>
      %cst_23 = arith.constant 2.500000e-01 : f32
      %20 = vector.broadcast %cst_23 : f32 to vector<1x256xf32>
      %21 = arith.mulf %19, %20 : vector<1x256xf32>
      %c0_24 = arith.constant 0 : index
      %c0_25 = arith.constant 0 : index
      %c128 = arith.constant 128 : index
      %22 = vector.load %arg5[%c0_24, %c0_25, %c128] : memref<2x1x512xf32, #tpu.memory_space<vmem>>, vector<1x1x256xf32>
      %23 = vector.shape_cast %22 : vector<1x1x256xf32> to vector<1x256xf32>
      %24 = vector.shape_cast %21 : vector<1x256xf32> to vector<1x1x256xf32>
      tpu.vector_store %arg5[%c0_24, %c0_25, %c128], %24 {strides = array<i32>} : memref<2x1x512xf32, #tpu.memory_space<vmem>>, vector<1x1x256xf32>,
      %c0_26 = arith.constant 0 : index
      %c0_27 = arith.constant 0 : index
      %25 = vector.load %arg7[%c0_26, %c0_27] : memref<1x256xf32, #tpu.memory_space<vmem>>, vector<1x256xf32>
      %c1 = arith.constant 1 : index
      %c0_28 = arith.constant 0 : index
      %c128_29 = arith.constant 128 : index
      %26 = vector.load %arg5[%c1, %c0_28, %c128_29] : memref<2x1x512xf32, #tpu.memory_space<vmem>>, vector<1x1x256xf32>
      %27 = vector.shape_cast %26 : vector<1x1x256xf32> to vector<1x256xf32>
      %28 = vector.shape_cast %25 : vector<1x256xf32> to vector<1x1x256xf32>
      tpu.vector_store %arg5[%c1, %c0_28, %c128_29], %28 {strides = array<i32>} : memref<2x1x512xf32, #tpu.memory_space<vmem>>, vector<1x1x256xf32>,
      %29 = tpu.iota {dimensions = array<i32: 1>} : vector<1x256xi32>
      %c16_i32 = arith.constant 16 : i32
      %c0_i32_30 = arith.constant 0 : i32
      %30 = arith.cmpi eq, %c16_i32, %c0_i32_30 : i32
      %c1_i32 = arith.constant 1 : i32
      %31 = arith.select %30, %c1_i32, %c16_i32 : i32
      %32 = vector.broadcast %31 : i32 to vector<1x256xi32>
      %33 = arith.remsi %29, %32 : vector<1x256xi32>
      %c0_i32_31 = arith.constant 0 : i32
      %34 = vector.broadcast %c0_i32_31 : i32 to vector<1x256xi32>
      %35 = arith.cmpi ne, %33, %34 : vector<1x256xi32>
      %c0_i32_32 = arith.constant 0 : i32
      %36 = vector.broadcast %c0_i32_32 : i32 to vector<1x256xi32>
      %37 = arith.cmpi slt, %33, %36 : vector<1x256xi32>
      %c0_i32_33 = arith.constant 0 : i32
      %38 = arith.cmpi slt, %31, %c0_i32_33 : i32
      %39 = vector.broadcast %38 : i1 to vector<1x256xi1>
      %40 = vector.broadcast %39 : vector<1x256xi1> to vector<1x256xi1>
      %41 = arith.xori %37, %40 : vector<1x256xi1>
      %42 = arith.andi %41, %35 : vector<1x256xi1>
      %43 = vector.broadcast %31 : i32 to vector<1x256xi32>
      %44 = arith.addi %33, %43 : vector<1x256xi32>
      %45 = arith.select %42, %44, %33 : vector<1x256xi1>, vector<1x256xi32>
      %cst_34 = arith.constant 0.000000e+00 : f32
      %46 = vector.broadcast %cst_34 : f32 to vector<1x256xf32>
      %cst_35 = arith.constant 0.000000e+00 : f32
      %47 = vector.broadcast %cst_35 : f32 to vector<1x256xf32>
      %c0_36 = arith.constant 0 : index
      %48 = memref.load %arg3[%c0_36] : memref<98xf32, #tpu.memory_space<smem>>
      %c49 = arith.constant 49 : index
      %49 = memref.load %arg3[%c49] : memref<98xf32, #tpu.memory_space<smem>>
      %c0_37 = arith.constant 0 : index
      %c0_38 = arith.constant 0 : index
      %c77 = arith.constant 77 : index
      %50 = vector.load %arg5[%c0_37, %c0_38, %c77] : memref<2x1x512xf32, #tpu.memory_space<vmem>>, vector<1x1x256xf32>
      %51 = vector.shape_cast %50 : vector<1x1x256xf32> to vector<1x256xf32>
      %52 = vector.broadcast %48 : f32 to vector<1x256xf32>
      %53 = arith.mulf %51, %52 : vector<1x256xf32>
      %54 = arith.addf %47, %53 : vector<1x256xf32>
      %c1_39 = arith.constant 1 : index
      %c0_40 = arith.constant 0 : index
      %c77_41 = arith.constant 77 : index
      %55 = vector.load %arg5[%c1_39, %c0_40, %c77_41] : memref<2x1x512xf32, #tpu.memory_space<vmem>>, vector<1x1x256xf32>
      %56 = vector.shape_cast %55 : vector<1x1x256xf32> to vector<1x256xf32>
      %57 = vector.broadcast %49 : f32 to vector<1x256xf32>
      %58 = arith.mulf %56, %57 : vector<1x256xf32>
      %59 = arith.addf %54, %58 : vector<1x256xf32>
      %c7 = arith.constant 7 : index
      %60 = memref.load %arg3[%c7] : memref<98xf32, #tpu.memory_space<smem>>
      %c56 = arith.constant 56 : index
      %61 = memref.load %arg3[%c56] : memref<98xf32, #tpu.memory_space<smem>>
      %c0_42 = arith.constant 0 : index
      %c0_43 = arith.constant 0 : index
      %c93 = arith.constant 93 : index
      %62 = vector.load %arg5[%c0_42, %c0_43, %c93] : memref<2x1x512xf32, #tpu.memory_space<vmem>>, vector<1x1x256xf32>
      %63 = vector.shape_cast %62 : vector<1x1x256xf32> to vector<1x256xf32>
      %64 = vector.broadcast %60 : f32 to vector<1x256xf32>
      %65 = arith.mulf %63, %64 : vector<1x256xf32>
      %66 = arith.addf %59, %65 : vector<1x256xf32>
      %c1_44 = arith.constant 1 : index
      %c0_45 = arith.constant 0 : index
      %c93_46 = arith.constant 93 : index
      %67 = vector.load %arg5[%c1_44, %c0_45, %c93_46] : memref<2x1x512xf32, #tpu.memory_space<vmem>>, vector<1x1x256xf32>
      %68 = vector.shape_cast %67 : vector<1x1x256xf32> to vector<1x256xf32>
      %69 = vector.broadcast %61 : f32 to vector<1x256xf32>
      %70 = arith.mulf %68, %69 : vector<1x256xf32>
      %71 = arith.addf %66, %70 : vector<1x256xf32>
      %c14 = arith.constant 14 : index
      %72 = memref.load %arg3[%c14] : memref<98xf32, #tpu.memory_space<smem>>
      %c63 = arith.constant 63 : index
      %73 = memref.load %arg3[%c63] : memref<98xf32, #tpu.memory_space<smem>>
      %c0_47 = arith.constant 0 : index
      %c0_48 = arith.constant 0 : index
      %c109 = arith.constant 109 : index
      %74 = vector.load %arg5[%c0_47, %c0_48, %c109] : memref<2x1x512xf32, #tpu.memory_space<vmem>>, vector<1x1x256xf32>
      %75 = vector.shape_cast %74 : vector<1x1x256xf32> to vector<1x256xf32>
      %76 = vector.broadcast %72 : f32 to vector<1x256xf32>
      %77 = arith.mulf %75, %76 : vector<1x256xf32>
      %78 = arith.addf %71, %77 : vector<1x256xf32>
      %c1_49 = arith.constant 1 : index
      %c0_50 = arith.constant 0 : index
      %c109_51 = arith.constant 109 : index
      %79 = vector.load %arg5[%c1_49, %c0_50, %c109_51] : memref<2x1x512xf32, #tpu.memory_space<vmem>>, vector<1x1x256xf32>
      %80 = vector.shape_cast %79 : vector<1x1x256xf32> to vector<1x256xf32>
      %81 = vector.broadcast %73 : f32 to vector<1x256xf32>
      %82 = arith.mulf %80, %81 : vector<1x256xf32>
      %83 = arith.addf %78, %82 : vector<1x256xf32>
      %c21 = arith.constant 21 : index
      %84 = memref.load %arg3[%c21] : memref<98xf32, #tpu.memory_space<smem>>
      %c70 = arith.constant 70 : index
      %85 = memref.load %arg3[%c70] : memref<98xf32, #tpu.memory_space<smem>>
      %c0_52 = arith.constant 0 : index
      %c0_53 = arith.constant 0 : index
      %c125 = arith.constant 125 : index
      %86 = vector.load %arg5[%c0_52, %c0_53, %c125] : memref<2x1x512xf32, #tpu.memory_space<vmem>>, vector<1x1x256xf32>
      %87 = vector.shape_cast %86 : vector<1x1x256xf32> to vector<1x256xf32>
      %88 = vector.broadcast %84 : f32 to vector<1x256xf32>
      %89 = arith.mulf %87, %88 : vector<1x256xf32>
      %90 = arith.addf %83, %89 : vector<1x256xf32>
      %c1_54 = arith.constant 1 : index
      %c0_55 = arith.constant 0 : index
      %c125_56 = arith.constant 125 : index
      %91 = vector.load %arg5[%c1_54, %c0_55, %c125_56] : memref<2x1x512xf32, #tpu.memory_space<vmem>>, vector<1x1x256xf32>
      %92 = vector.shape_cast %91 : vector<1x1x256xf32> to vector<1x256xf32>
      %93 = vector.broadcast %85 : f32 to vector<1x256xf32>
      %94 = arith.mulf %92, %93 : vector<1x256xf32>
      %95 = arith.addf %90, %94 : vector<1x256xf32>
      %c28 = arith.constant 28 : index
      %96 = memref.load %arg3[%c28] : memref<98xf32, #tpu.memory_space<smem>>
      %c77_57 = arith.constant 77 : index
      %97 = memref.load %arg3[%c77_57] : memref<98xf32, #tpu.memory_space<smem>>
      %c0_58 = arith.constant 0 : index
      %c0_59 = arith.constant 0 : index
      %c141 = arith.constant 141 : index
      %98 = vector.load %arg5[%c0_58, %c0_59, %c141] : memref<2x1x512xf32, #tpu.memory_space<vmem>>, vector<1x1x256xf32>
      %99 = vector.shape_cast %98 : vector<1x1x256xf32> to vector<1x256xf32>
      %100 = vector.broadcast %96 : f32 to vector<1x256xf32>
      %101 = arith.mulf %99, %100 : vector<1x256xf32>
      %102 = arith.addf %95, %101 : vector<1x256xf32>
      %c1_60 = arith.constant 1 : index
      %c0_61 = arith.constant 0 : index
      %c141_62 = arith.constant 141 : index
      %103 = vector.load %arg5[%c1_60, %c0_61, %c141_62] : memref<2x1x512xf32, #tpu.memory_space<vmem>>, vector<1x1x256xf32>
      %104 = vector.shape_cast %103 : vector<1x1x256xf32> to vector<1x256xf32>
      %105 = vector.broadcast %97 : f32 to vector<1x256xf32>
      %106 = arith.mulf %104, %105 : vector<1x256xf32>
      %107 = arith.addf %102, %106 : vector<1x256xf32>
      %c35 = arith.constant 35 : index
      %108 = memref.load %arg3[%c35] : memref<98xf32, #tpu.memory_space<smem>>
      %c84 = arith.constant 84 : index
      %109 = memref.load %arg3[%c84] : memref<98xf32, #tpu.memory_space<smem>>
      %c0_63 = arith.constant 0 : index
      %c0_64 = arith.constant 0 : index
      %c157 = arith.constant 157 : index
      %110 = vector.load %arg5[%c0_63, %c0_64, %c157] : memref<2x1x512xf32, #tpu.memory_space<vmem>>, vector<1x1x256xf32>
      %111 = vector.shape_cast %110 : vector<1x1x256xf32> to vector<1x256xf32>
      %112 = vector.broadcast %108 : f32 to vector<1x256xf32>
      %113 = arith.mulf %111, %112 : vector<1x256xf32>
      %114 = arith.addf %107, %113 : vector<1x256xf32>
      %c1_65 = arith.constant 1 : index
      %c0_66 = arith.constant 0 : index
      %c157_67 = arith.constant 157 : index
      %115 = vector.load %arg5[%c1_65, %c0_66, %c157_67] : memref<2x1x512xf32, #tpu.memory_space<vmem>>, vector<1x1x256xf32>
      %116 = vector.shape_cast %115 : vector<1x1x256xf32> to vector<1x256xf32>
      %117 = vector.broadcast %109 : f32 to vector<1x256xf32>
      %118 = arith.mulf %116, %117 : vector<1x256xf32>
      %119 = arith.addf %114, %118 : vector<1x256xf32>
      %c42 = arith.constant 42 : index
      %120 = memref.load %arg3[%c42] : memref<98xf32, #tpu.memory_space<smem>>
      %c91 = arith.constant 91 : index
      %121 = memref.load %arg3[%c91] : memref<98xf32, #tpu.memory_space<smem>>
      %c0_68 = arith.constant 0 : index
      %c0_69 = arith.constant 0 : index
      %c173 = arith.constant 173 : index
      %122 = vector.load %arg5[%c0_68, %c0_69, %c173] : memref<2x1x512xf32, #tpu.memory_space<vmem>>, vector<1x1x256xf32>
      %123 = vector.shape_cast %122 : vector<1x1x256xf32> to vector<1x256xf32>
      %124 = vector.broadcast %120 : f32 to vector<1x256xf32>
      %125 = arith.mulf %123, %124 : vector<1x256xf32>
      %126 = arith.addf %119, %125 : vector<1x256xf32>
      %c1_70 = arith.constant 1 : index
      %c0_71 = arith.constant 0 : index
      %c173_72 = arith.constant 173 : index
      %127 = vector.load %arg5[%c1_70, %c0_71, %c173_72] : memref<2x1x512xf32, #tpu.memory_space<vmem>>, vector<1x1x256xf32>
      %128 = vector.shape_cast %127 : vector<1x1x256xf32> to vector<1x256xf32>
      %129 = vector.broadcast %121 : f32 to vector<1x256xf32>
      %130 = arith.mulf %128, %129 : vector<1x256xf32>
      %131 = arith.addf %126, %130 : vector<1x256xf32>
      %c-3_i32 = arith.constant -3 : i32
      %132 = vector.broadcast %c-3_i32 : i32 to vector<1x256xi32>
      %133 = arith.addi %45, %132 : vector<1x256xi32>
      %c0_i32_73 = arith.constant 0 : i32
      %134 = vector.broadcast %c0_i32_73 : i32 to vector<1x256xi32>
      %135 = arith.cmpi sge, %133, %134 : vector<1x256xi32>
      %c-3_i32_74 = arith.constant -3 : i32
      %136 = vector.broadcast %c-3_i32_74 : i32 to vector<1x256xi32>
      %137 = arith.addi %45, %136 : vector<1x256xi32>
      %c16_i32_75 = arith.constant 16 : i32
      %138 = vector.broadcast %c16_i32_75 : i32 to vector<1x256xi32>
      %139 = arith.cmpi slt, %137, %138 : vector<1x256xi32>
      %140 = arith.andi %135, %139 : vector<1x256xi1>
      %cst_76 = arith.constant 0.000000e+00 : f32
      %141 = vector.broadcast %cst_76 : f32 to vector<1x256xf32>
      %142 = arith.select %140, %131, %141 : vector<1x256xi1>, vector<1x256xf32>
      %143 = arith.addf %46, %142 : vector<1x256xf32>
      %cst_77 = arith.constant 0.000000e+00 : f32
      %144 = vector.broadcast %cst_77 : f32 to vector<1x256xf32>
      %c1_78 = arith.constant 1 : index
      %145 = memref.load %arg3[%c1_78] : memref<98xf32, #tpu.memory_space<smem>>
      %c50 = arith.constant 50 : index
      %146 = memref.load %arg3[%c50] : memref<98xf32, #tpu.memory_space<smem>>
      %c0_79 = arith.constant 0 : index
      %c0_80 = arith.constant 0 : index
      %c78 = arith.constant 78 : index
      %147 = vector.load %arg5[%c0_79, %c0_80, %c78] : memref<2x1x512xf32, #tpu.memory_space<vmem>>, vector<1x1x256xf32>
      %148 = vector.shape_cast %147 : vector<1x1x256xf32> to vector<1x256xf32>
      %149 = vector.broadcast %145 : f32 to vector<1x256xf32>
      %150 = arith.mulf %148, %149 : vector<1x256xf32>
      %151 = arith.addf %144, %150 : vector<1x256xf32>
      %c1_81 = arith.constant 1 : index
      %c0_82 = arith.constant 0 : index
      %c78_83 = arith.constant 78 : index
      %152 = vector.load %arg5[%c1_81, %c0_82, %c78_83] : memref<2x1x512xf32, #tpu.memory_space<vmem>>, vector<1x1x256xf32>
      %153 = vector.shape_cast %152 : vector<1x1x256xf32> to vector<1x256xf32>
      %154 = vector.broadcast %146 : f32 to vector<1x256xf32>
      %155 = arith.mulf %153, %154 : vector<1x256xf32>
      %156 = arith.addf %151, %155 : vector<1x256xf32>
      %c8 = arith.constant 8 : index
      %157 = memref.load %arg3[%c8] : memref<98xf32, #tpu.memory_space<smem>>
      %c57 = arith.constant 57 : index
      %158 = memref.load %arg3[%c57] : memref<98xf32, #tpu.memory_space<smem>>
      %c0_84 = arith.constant 0 : index
      %c0_85 = arith.constant 0 : index
      %c94 = arith.constant 94 : index
      %159 = vector.load %arg5[%c0_84, %c0_85, %c94] : memref<2x1x512xf32, #tpu.memory_space<vmem>>, vector<1x1x256xf32>
      %160 = vector.shape_cast %159 : vector<1x1x256xf32> to vector<1x256xf32>
      %161 = vector.broadcast %157 : f32 to vector<1x256xf32>
      %162 = arith.mulf %160, %161 : vector<1x256xf32>
      %163 = arith.addf %156, %162 : vector<1x256xf32>
      %c1_86 = arith.constant 1 : index
      %c0_87 = arith.constant 0 : index
      %c94_88 = arith.constant 94 : index
      %164 = vector.load %arg5[%c1_86, %c0_87, %c94_88] : memref<2x1x512xf32, #tpu.memory_space<vmem>>, vector<1x1x256xf32>
      %165 = vector.shape_cast %164 : vector<1x1x256xf32> to vector<1x256xf32>
      %166 = vector.broadcast %158 : f32 to vector<1x256xf32>
      %167 = arith.mulf %165, %166 : vector<1x256xf32>
      %168 = arith.addf %163, %167 : vector<1x256xf32>
      %c15 = arith.constant 15 : index
      %169 = memref.load %arg3[%c15] : memref<98xf32, #tpu.memory_space<smem>>
      %c64 = arith.constant 64 : index
      %170 = memref.load %arg3[%c64] : memref<98xf32, #tpu.memory_space<smem>>
      %c0_89 = arith.constant 0 : index
      %c0_90 = arith.constant 0 : index
      %c110 = arith.constant 110 : index
      %171 = vector.load %arg5[%c0_89, %c0_90, %c110] : memref<2x1x512xf32, #tpu.memory_space<vmem>>, vector<1x1x256xf32>
      %172 = vector.shape_cast %171 : vector<1x1x256xf32> to vector<1x256xf32>
      %173 = vector.broadcast %169 : f32 to vector<1x256xf32>
      %174 = arith.mulf %172, %173 : vector<1x256xf32>
      %175 = arith.addf %168, %174 : vector<1x256xf32>
      %c1_91 = arith.constant 1 : index
      %c0_92 = arith.constant 0 : index
      %c110_93 = arith.constant 110 : index
      %176 = vector.load %arg5[%c1_91, %c0_92, %c110_93] : memref<2x1x512xf32, #tpu.memory_space<vmem>>, vector<1x1x256xf32>
      %177 = vector.shape_cast %176 : vector<1x1x256xf32> to vector<1x256xf32>
      %178 = vector.broadcast %170 : f32 to vector<1x256xf32>
      %179 = arith.mulf %177, %178 : vector<1x256xf32>
      %180 = arith.addf %175, %179 : vector<1x256xf32>
      %c22 = arith.constant 22 : index
      %181 = memref.load %arg3[%c22] : memref<98xf32, #tpu.memory_space<smem>>
      %c71 = arith.constant 71 : index
      %182 = memref.load %arg3[%c71] : memref<98xf32, #tpu.memory_space<smem>>
      %c0_94 = arith.constant 0 : index
      %c0_95 = arith.constant 0 : index
      %c126 = arith.constant 126 : index
      %183 = vector.load %arg5[%c0_94, %c0_95, %c126] : memref<2x1x512xf32, #tpu.memory_space<vmem>>, vector<1x1x256xf32>
      %184 = vector.shape_cast %183 : vector<1x1x256xf32> to vector<1x256xf32>
      %185 = vector.broadcast %181 : f32 to vector<1x256xf32>
      %186 = arith.mulf %184, %185 : vector<1x256xf32>
      %187 = arith.addf %180, %186 : vector<1x256xf32>
      %c1_96 = arith.constant 1 : index
      %c0_97 = arith.constant 0 : index
      %c126_98 = arith.constant 126 : index
      %188 = vector.load %arg5[%c1_96, %c0_97, %c126_98] : memref<2x1x512xf32, #tpu.memory_space<vmem>>, vector<1x1x256xf32>
      %189 = vector.shape_cast %188 : vector<1x1x256xf32> to vector<1x256xf32>
      %190 = vector.broadcast %182 : f32 to vector<1x256xf32>
      %191 = arith.mulf %189, %190 : vector<1x256xf32>
      %192 = arith.addf %187, %191 : vector<1x256xf32>
      %c29 = arith.constant 29 : index
      %193 = memref.load %arg3[%c29] : memref<98xf32, #tpu.memory_space<smem>>
      %c78_99 = arith.constant 78 : index
      %194 = memref.load %arg3[%c78_99] : memref<98xf32, #tpu.memory_space<smem>>
      %c0_100 = arith.constant 0 : index
      %c0_101 = arith.constant 0 : index
      %c142 = arith.constant 142 : index
      %195 = vector.load %arg5[%c0_100, %c0_101, %c142] : memref<2x1x512xf32, #tpu.memory_space<vmem>>, vector<1x1x256xf32>
      %196 = vector.shape_cast %195 : vector<1x1x256xf32> to vector<1x256xf32>
      %197 = vector.broadcast %193 : f32 to vector<1x256xf32>
      %198 = arith.mulf %196, %197 : vector<1x256xf32>
      %199 = arith.addf %192, %198 : vector<1x256xf32>
      %c1_102 = arith.constant 1 : index
      %c0_103 = arith.constant 0 : index
      %c142_104 = arith.constant 142 : index
      %200 = vector.load %arg5[%c1_102, %c0_103, %c142_104] : memref<2x1x512xf32, #tpu.memory_space<vmem>>, vector<1x1x256xf32>
      %201 = vector.shape_cast %200 : vector<1x1x256xf32> to vector<1x256xf32>
      %202 = vector.broadcast %194 : f32 to vector<1x256xf32>
      %203 = arith.mulf %201, %202 : vector<1x256xf32>
      %204 = arith.addf %199, %203 : vector<1x256xf32>
      %c36 = arith.constant 36 : index
      %205 = memref.load %arg3[%c36] : memref<98xf32, #tpu.memory_space<smem>>
      %c85 = arith.constant 85 : index
      %206 = memref.load %arg3[%c85] : memref<98xf32, #tpu.memory_space<smem>>
      %c0_105 = arith.constant 0 : index
      %c0_106 = arith.constant 0 : index
      %c158 = arith.constant 158 : index
      %207 = vector.load %arg5[%c0_105, %c0_106, %c158] : memref<2x1x512xf32, #tpu.memory_space<vmem>>, vector<1x1x256xf32>
      %208 = vector.shape_cast %207 : vector<1x1x256xf32> to vector<1x256xf32>
      %209 = vector.broadcast %205 : f32 to vector<1x256xf32>
      %210 = arith.mulf %208, %209 : vector<1x256xf32>
      %211 = arith.addf %204, %210 : vector<1x256xf32>
      %c1_107 = arith.constant 1 : index
      %c0_108 = arith.constant 0 : index
      %c158_109 = arith.constant 158 : index
      %212 = vector.load %arg5[%c1_107, %c0_108, %c158_109] : memref<2x1x512xf32, #tpu.memory_space<vmem>>, vector<1x1x256xf32>
      %213 = vector.shape_cast %212 : vector<1x1x256xf32> to vector<1x256xf32>
      %214 = vector.broadcast %206 : f32 to vector<1x256xf32>
      %215 = arith.mulf %213, %214 : vector<1x256xf32>
      %216 = arith.addf %211, %215 : vector<1x256xf32>
      %c43 = arith.constant 43 : index
      %217 = memref.load %arg3[%c43] : memref<98xf32, #tpu.memory_space<smem>>
      %c92 = arith.constant 92 : index
      %218 = memref.load %arg3[%c92] : memref<98xf32, #tpu.memory_space<smem>>
      %c0_110 = arith.constant 0 : index
      %c0_111 = arith.constant 0 : index
      %c174 = arith.constant 174 : index
      %219 = vector.load %arg5[%c0_110, %c0_111, %c174] : memref<2x1x512xf32, #tpu.memory_space<vmem>>, vector<1x1x256xf32>
      %220 = vector.shape_cast %219 : vector<1x1x256xf32> to vector<1x256xf32>
      %221 = vector.broadcast %217 : f32 to vector<1x256xf32>
      %222 = arith.mulf %220, %221 : vector<1x256xf32>
      %223 = arith.addf %216, %222 : vector<1x256xf32>
      %c1_112 = arith.constant 1 : index
      %c0_113 = arith.constant 0 : index
      %c174_114 = arith.constant 174 : index
      %224 = vector.load %arg5[%c1_112, %c0_113, %c174_114] : memref<2x1x512xf32, #tpu.memory_space<vmem>>, vector<1x1x256xf32>
      %225 = vector.shape_cast %224 : vector<1x1x256xf32> to vector<1x256xf32>
      %226 = vector.broadcast %218 : f32 to vector<1x256xf32>
      %227 = arith.mulf %225, %226 : vector<1x256xf32>
      %228 = arith.addf %223, %227 : vector<1x256xf32>
      %c-2_i32 = arith.constant -2 : i32
      %229 = vector.broadcast %c-2_i32 : i32 to vector<1x256xi32>
      %230 = arith.addi %45, %229 : vector<1x256xi32>
      %c0_i32_115 = arith.constant 0 : i32
      %231 = vector.broadcast %c0_i32_115 : i32 to vector<1x256xi32>
      %232 = arith.cmpi sge, %230, %231 : vector<1x256xi32>
      %c-2_i32_116 = arith.constant -2 : i32
      %233 = vector.broadcast %c-2_i32_116 : i32 to vector<1x256xi32>
      %234 = arith.addi %45, %233 : vector<1x256xi32>
      %c16_i32_117 = arith.constant 16 : i32
      %235 = vector.broadcast %c16_i32_117 : i32 to vector<1x256xi32>
      %236 = arith.cmpi slt, %234, %235 : vector<1x256xi32>
      %237 = arith.andi %232, %236 : vector<1x256xi1>
      %cst_118 = arith.constant 0.000000e+00 : f32
      %238 = vector.broadcast %cst_118 : f32 to vector<1x256xf32>
      %239 = arith.select %237, %228, %238 : vector<1x256xi1>, vector<1x256xf32>
      %240 = arith.addf %143, %239 : vector<1x256xf32>
      %cst_119 = arith.constant 0.000000e+00 : f32
      %241 = vector.broadcast %cst_119 : f32 to vector<1x256xf32>
      %c2 = arith.constant 2 : index
      %242 = memref.load %arg3[%c2] : memref<98xf32, #tpu.memory_space<smem>>
      %c51 = arith.constant 51 : index
      %243 = memref.load %arg3[%c51] : memref<98xf32, #tpu.memory_space<smem>>
      %c0_120 = arith.constant 0 : index
      %c0_121 = arith.constant 0 : index
      %c79 = arith.constant 79 : index
      %244 = vector.load %arg5[%c0_120, %c0_121, %c79] : memref<2x1x512xf32, #tpu.memory_space<vmem>>, vector<1x1x256xf32>
      %245 = vector.shape_cast %244 : vector<1x1x256xf32> to vector<1x256xf32>
      %246 = vector.broadcast %242 : f32 to vector<1x256xf32>
      %247 = arith.mulf %245, %246 : vector<1x256xf32>
      %248 = arith.addf %241, %247 : vector<1x256xf32>
      %c1_122 = arith.constant 1 : index
      %c0_123 = arith.constant 0 : index
      %c79_124 = arith.constant 79 : index
      %249 = vector.load %arg5[%c1_122, %c0_123, %c79_124] : memref<2x1x512xf32, #tpu.memory_space<vmem>>, vector<1x1x256xf32>
      %250 = vector.shape_cast %249 : vector<1x1x256xf32> to vector<1x256xf32>
      %251 = vector.broadcast %243 : f32 to vector<1x256xf32>
      %252 = arith.mulf %250, %251 : vector<1x256xf32>
      %253 = arith.addf %248, %252 : vector<1x256xf32>
      %c9 = arith.constant 9 : index
      %254 = memref.load %arg3[%c9] : memref<98xf32, #tpu.memory_space<smem>>
      %c58 = arith.constant 58 : index
      %255 = memref.load %arg3[%c58] : memref<98xf32, #tpu.memory_space<smem>>
      %c0_125 = arith.constant 0 : index
      %c0_126 = arith.constant 0 : index
      %c95 = arith.constant 95 : index
      %256 = vector.load %arg5[%c0_125, %c0_126, %c95] : memref<2x1x512xf32, #tpu.memory_space<vmem>>, vector<1x1x256xf32>
      %257 = vector.shape_cast %256 : vector<1x1x256xf32> to vector<1x256xf32>
      %258 = vector.broadcast %254 : f32 to vector<1x256xf32>
      %259 = arith.mulf %257, %258 : vector<1x256xf32>
      %260 = arith.addf %253, %259 : vector<1x256xf32>
      %c1_127 = arith.constant 1 : index
      %c0_128 = arith.constant 0 : index
      %c95_129 = arith.constant 95 : index
      %261 = vector.load %arg5[%c1_127, %c0_128, %c95_129] : memref<2x1x512xf32, #tpu.memory_space<vmem>>, vector<1x1x256xf32>
      %262 = vector.shape_cast %261 : vector<1x1x256xf32> to vector<1x256xf32>
      %263 = vector.broadcast %255 : f32 to vector<1x256xf32>
      %264 = arith.mulf %262, %263 : vector<1x256xf32>
      %265 = arith.addf %260, %264 : vector<1x256xf32>
      %c16 = arith.constant 16 : index
      %266 = memref.load %arg3[%c16] : memref<98xf32, #tpu.memory_space<smem>>
      %c65 = arith.constant 65 : index
      %267 = memref.load %arg3[%c65] : memref<98xf32, #tpu.memory_space<smem>>
      %c0_130 = arith.constant 0 : index
      %c0_131 = arith.constant 0 : index
      %c111 = arith.constant 111 : index
      %268 = vector.load %arg5[%c0_130, %c0_131, %c111] : memref<2x1x512xf32, #tpu.memory_space<vmem>>, vector<1x1x256xf32>
      %269 = vector.shape_cast %268 : vector<1x1x256xf32> to vector<1x256xf32>
      %270 = vector.broadcast %266 : f32 to vector<1x256xf32>
      %271 = arith.mulf %269, %270 : vector<1x256xf32>
      %272 = arith.addf %265, %271 : vector<1x256xf32>
      %c1_132 = arith.constant 1 : index
      %c0_133 = arith.constant 0 : index
      %c111_134 = arith.constant 111 : index
      %273 = vector.load %arg5[%c1_132, %c0_133, %c111_134] : memref<2x1x512xf32, #tpu.memory_space<vmem>>, vector<1x1x256xf32>
      %274 = vector.shape_cast %273 : vector<1x1x256xf32> to vector<1x256xf32>
      %275 = vector.broadcast %267 : f32 to vector<1x256xf32>
      %276 = arith.mulf %274, %275 : vector<1x256xf32>
      %277 = arith.addf %272, %276 : vector<1x256xf32>
      %c23 = arith.constant 23 : index
      %278 = memref.load %arg3[%c23] : memref<98xf32, #tpu.memory_space<smem>>
      %c72 = arith.constant 72 : index
      %279 = memref.load %arg3[%c72] : memref<98xf32, #tpu.memory_space<smem>>
      %c0_135 = arith.constant 0 : index
      %c0_136 = arith.constant 0 : index
      %c127 = arith.constant 127 : index
      %280 = vector.load %arg5[%c0_135, %c0_136, %c127] : memref<2x1x512xf32, #tpu.memory_space<vmem>>, vector<1x1x256xf32>
      %281 = vector.shape_cast %280 : vector<1x1x256xf32> to vector<1x256xf32>
      %282 = vector.broadcast %278 : f32 to vector<1x256xf32>
      %283 = arith.mulf %281, %282 : vector<1x256xf32>
      %284 = arith.addf %277, %283 : vector<1x256xf32>
      %c1_137 = arith.constant 1 : index
      %c0_138 = arith.constant 0 : index
      %c127_139 = arith.constant 127 : index
      %285 = vector.load %arg5[%c1_137, %c0_138, %c127_139] : memref<2x1x512xf32, #tpu.memory_space<vmem>>, vector<1x1x256xf32>
      %286 = vector.shape_cast %285 : vector<1x1x256xf32> to vector<1x256xf32>
      %287 = vector.broadcast %279 : f32 to vector<1x256xf32>
      %288 = arith.mulf %286, %287 : vector<1x256xf32>
      %289 = arith.addf %284, %288 : vector<1x256xf32>
      %c30 = arith.constant 30 : index
      %290 = memref.load %arg3[%c30] : memref<98xf32, #tpu.memory_space<smem>>
      %c79_140 = arith.constant 79 : index
      %291 = memref.load %arg3[%c79_140] : memref<98xf32, #tpu.memory_space<smem>>
      %c0_141 = arith.constant 0 : index
      %c0_142 = arith.constant 0 : index
      %c143 = arith.constant 143 : index
      %292 = vector.load %arg5[%c0_141, %c0_142, %c143] : memref<2x1x512xf32, #tpu.memory_space<vmem>>, vector<1x1x256xf32>
      %293 = vector.shape_cast %292 : vector<1x1x256xf32> to vector<1x256xf32>
      %294 = vector.broadcast %290 : f32 to vector<1x256xf32>
      %295 = arith.mulf %293, %294 : vector<1x256xf32>
      %296 = arith.addf %289, %295 : vector<1x256xf32>
      %c1_143 = arith.constant 1 : index
      %c0_144 = arith.constant 0 : index
      %c143_145 = arith.constant 143 : index
      %297 = vector.load %arg5[%c1_143, %c0_144, %c143_145] : memref<2x1x512xf32, #tpu.memory_space<vmem>>, vector<1x1x256xf32>
      %298 = vector.shape_cast %297 : vector<1x1x256xf32> to vector<1x256xf32>
      %299 = vector.broadcast %291 : f32 to vector<1x256xf32>
      %300 = arith.mulf %298, %299 : vector<1x256xf32>
      %301 = arith.addf %296, %300 : vector<1x256xf32>
      %c37 = arith.constant 37 : index
      %302 = memref.load %arg3[%c37] : memref<98xf32, #tpu.memory_space<smem>>
      %c86 = arith.constant 86 : index
      %303 = memref.load %arg3[%c86] : memref<98xf32, #tpu.memory_space<smem>>
      %c0_146 = arith.constant 0 : index
      %c0_147 = arith.constant 0 : index
      %c159 = arith.constant 159 : index
      %304 = vector.load %arg5[%c0_146, %c0_147, %c159] : memref<2x1x512xf32, #tpu.memory_space<vmem>>, vector<1x1x256xf32>
      %305 = vector.shape_cast %304 : vector<1x1x256xf32> to vector<1x256xf32>
      %306 = vector.broadcast %302 : f32 to vector<1x256xf32>
      %307 = arith.mulf %305, %306 : vector<1x256xf32>
      %308 = arith.addf %301, %307 : vector<1x256xf32>
      %c1_148 = arith.constant 1 : index
      %c0_149 = arith.constant 0 : index
      %c159_150 = arith.constant 159 : index
      %309 = vector.load %arg5[%c1_148, %c0_149, %c159_150] : memref<2x1x512xf32, #tpu.memory_space<vmem>>, vector<1x1x256xf32>
      %310 = vector.shape_cast %309 : vector<1x1x256xf32> to vector<1x256xf32>
      %311 = vector.broadcast %303 : f32 to vector<1x256xf32>
      %312 = arith.mulf %310, %311 : vector<1x256xf32>
      %313 = arith.addf %308, %312 : vector<1x256xf32>
      %c44 = arith.constant 44 : index
      %314 = memref.load %arg3[%c44] : memref<98xf32, #tpu.memory_space<smem>>
      %c93_151 = arith.constant 93 : index
      %315 = memref.load %arg3[%c93_151] : memref<98xf32, #tpu.memory_space<smem>>
      %c0_152 = arith.constant 0 : index
      %c0_153 = arith.constant 0 : index
      %c175 = arith.constant 175 : index
      %316 = vector.load %arg5[%c0_152, %c0_153, %c175] : memref<2x1x512xf32, #tpu.memory_space<vmem>>, vector<1x1x256xf32>
      %317 = vector.shape_cast %316 : vector<1x1x256xf32> to vector<1x256xf32>
      %318 = vector.broadcast %314 : f32 to vector<1x256xf32>
      %319 = arith.mulf %317, %318 : vector<1x256xf32>
      %320 = arith.addf %313, %319 : vector<1x256xf32>
      %c1_154 = arith.constant 1 : index
      %c0_155 = arith.constant 0 : index
      %c175_156 = arith.constant 175 : index
      %321 = vector.load %arg5[%c1_154, %c0_155, %c175_156] : memref<2x1x512xf32, #tpu.memory_space<vmem>>, vector<1x1x256xf32>
      %322 = vector.shape_cast %321 : vector<1x1x256xf32> to vector<1x256xf32>
      %323 = vector.broadcast %315 : f32 to vector<1x256xf32>
      %324 = arith.mulf %322, %323 : vector<1x256xf32>
      %325 = arith.addf %320, %324 : vector<1x256xf32>
      %c-1_i32 = arith.constant -1 : i32
      %326 = vector.broadcast %c-1_i32 : i32 to vector<1x256xi32>
      %327 = arith.addi %45, %326 : vector<1x256xi32>
      %c0_i32_157 = arith.constant 0 : i32
      %328 = vector.broadcast %c0_i32_157 : i32 to vector<1x256xi32>
      %329 = arith.cmpi sge, %327, %328 : vector<1x256xi32>
      %c-1_i32_158 = arith.constant -1 : i32
      %330 = vector.broadcast %c-1_i32_158 : i32 to vector<1x256xi32>
      %331 = arith.addi %45, %330 : vector<1x256xi32>
      %c16_i32_159 = arith.constant 16 : i32
      %332 = vector.broadcast %c16_i32_159 : i32 to vector<1x256xi32>
      %333 = arith.cmpi slt, %331, %332 : vector<1x256xi32>
      %334 = arith.andi %329, %333 : vector<1x256xi1>
      %cst_160 = arith.constant 0.000000e+00 : f32
      %335 = vector.broadcast %cst_160 : f32 to vector<1x256xf32>
      %336 = arith.select %334, %325, %335 : vector<1x256xi1>, vector<1x256xf32>
      %337 = arith.addf %240, %336 : vector<1x256xf32>
      %cst_161 = arith.constant 0.000000e+00 : f32
      %338 = vector.broadcast %cst_161 : f32 to vector<1x256xf32>
      %c3 = arith.constant 3 : index
      %339 = memref.load %arg3[%c3] : memref<98xf32, #tpu.memory_space<smem>>
      %c52 = arith.constant 52 : index
      %340 = memref.load %arg3[%c52] : memref<98xf32, #tpu.memory_space<smem>>
      %c0_162 = arith.constant 0 : index
      %c0_163 = arith.constant 0 : index
      %c80 = arith.constant 80 : index
      %341 = vector.load %arg5[%c0_162, %c0_163, %c80] : memref<2x1x512xf32, #tpu.memory_space<vmem>>, vector<1x1x256xf32>
      %342 = vector.shape_cast %341 : vector<1x1x256xf32> to vector<1x256xf32>
      %343 = vector.broadcast %339 : f32 to vector<1x256xf32>
      %344 = arith.mulf %342, %343 : vector<1x256xf32>
      %345 = arith.addf %338, %344 : vector<1x256xf32>
      %c1_164 = arith.constant 1 : index
      %c0_165 = arith.constant 0 : index
      %c80_166 = arith.constant 80 : index
      %346 = vector.load %arg5[%c1_164, %c0_165, %c80_166] : memref<2x1x512xf32, #tpu.memory_space<vmem>>, vector<1x1x256xf32>
      %347 = vector.shape_cast %346 : vector<1x1x256xf32> to vector<1x256xf32>
      %348 = vector.broadcast %340 : f32 to vector<1x256xf32>
      %349 = arith.mulf %347, %348 : vector<1x256xf32>
      %350 = arith.addf %345, %349 : vector<1x256xf32>
      %c10 = arith.constant 10 : index
      %351 = memref.load %arg3[%c10] : memref<98xf32, #tpu.memory_space<smem>>
      %c59 = arith.constant 59 : index
      %352 = memref.load %arg3[%c59] : memref<98xf32, #tpu.memory_space<smem>>
      %c0_167 = arith.constant 0 : index
      %c0_168 = arith.constant 0 : index
      %c96 = arith.constant 96 : index
      %353 = vector.load %arg5[%c0_167, %c0_168, %c96] : memref<2x1x512xf32, #tpu.memory_space<vmem>>, vector<1x1x256xf32>
      %354 = vector.shape_cast %353 : vector<1x1x256xf32> to vector<1x256xf32>
      %355 = vector.broadcast %351 : f32 to vector<1x256xf32>
      %356 = arith.mulf %354, %355 : vector<1x256xf32>
      %357 = arith.addf %350, %356 : vector<1x256xf32>
      %c1_169 = arith.constant 1 : index
      %c0_170 = arith.constant 0 : index
      %c96_171 = arith.constant 96 : index
      %358 = vector.load %arg5[%c1_169, %c0_170, %c96_171] : memref<2x1x512xf32, #tpu.memory_space<vmem>>, vector<1x1x256xf32>
      %359 = vector.shape_cast %358 : vector<1x1x256xf32> to vector<1x256xf32>
      %360 = vector.broadcast %352 : f32 to vector<1x256xf32>
      %361 = arith.mulf %359, %360 : vector<1x256xf32>
      %362 = arith.addf %357, %361 : vector<1x256xf32>
      %c17 = arith.constant 17 : index
      %363 = memref.load %arg3[%c17] : memref<98xf32, #tpu.memory_space<smem>>
      %c66 = arith.constant 66 : index
      %364 = memref.load %arg3[%c66] : memref<98xf32, #tpu.memory_space<smem>>
      %c0_172 = arith.constant 0 : index
      %c0_173 = arith.constant 0 : index
      %c112 = arith.constant 112 : index
      %365 = vector.load %arg5[%c0_172, %c0_173, %c112] : memref<2x1x512xf32, #tpu.memory_space<vmem>>, vector<1x1x256xf32>
      %366 = vector.shape_cast %365 : vector<1x1x256xf32> to vector<1x256xf32>
      %367 = vector.broadcast %363 : f32 to vector<1x256xf32>
      %368 = arith.mulf %366, %367 : vector<1x256xf32>
      %369 = arith.addf %362, %368 : vector<1x256xf32>
      %c1_174 = arith.constant 1 : index
      %c0_175 = arith.constant 0 : index
      %c112_176 = arith.constant 112 : index
      %370 = vector.load %arg5[%c1_174, %c0_175, %c112_176] : memref<2x1x512xf32, #tpu.memory_space<vmem>>, vector<1x1x256xf32>
      %371 = vector.shape_cast %370 : vector<1x1x256xf32> to vector<1x256xf32>
      %372 = vector.broadcast %364 : f32 to vector<1x256xf32>
      %373 = arith.mulf %371, %372 : vector<1x256xf32>
      %374 = arith.addf %369, %373 : vector<1x256xf32>
      %c24 = arith.constant 24 : index
      %375 = memref.load %arg3[%c24] : memref<98xf32, #tpu.memory_space<smem>>
      %c73 = arith.constant 73 : index
      %376 = memref.load %arg3[%c73] : memref<98xf32, #tpu.memory_space<smem>>
      %c0_177 = arith.constant 0 : index
      %c0_178 = arith.constant 0 : index
      %c128_179 = arith.constant 128 : index
      %377 = vector.load %arg5[%c0_177, %c0_178, %c128_179] : memref<2x1x512xf32, #tpu.memory_space<vmem>>, vector<1x1x256xf32>
      %378 = vector.shape_cast %377 : vector<1x1x256xf32> to vector<1x256xf32>
      %379 = vector.broadcast %375 : f32 to vector<1x256xf32>
      %380 = arith.mulf %378, %379 : vector<1x256xf32>
      %381 = arith.addf %374, %380 : vector<1x256xf32>
      %c1_180 = arith.constant 1 : index
      %c0_181 = arith.constant 0 : index
      %c128_182 = arith.constant 128 : index
      %382 = vector.load %arg5[%c1_180, %c0_181, %c128_182] : memref<2x1x512xf32, #tpu.memory_space<vmem>>, vector<1x1x256xf32>
      %383 = vector.shape_cast %382 : vector<1x1x256xf32> to vector<1x256xf32>
      %384 = vector.broadcast %376 : f32 to vector<1x256xf32>
      %385 = arith.mulf %383, %384 : vector<1x256xf32>
      %386 = arith.addf %381, %385 : vector<1x256xf32>
      %c31 = arith.constant 31 : index
      %387 = memref.load %arg3[%c31] : memref<98xf32, #tpu.memory_space<smem>>
      %c80_183 = arith.constant 80 : index
      %388 = memref.load %arg3[%c80_183] : memref<98xf32, #tpu.memory_space<smem>>
      %c0_184 = arith.constant 0 : index
      %c0_185 = arith.constant 0 : index
      %c144 = arith.constant 144 : index
      %389 = vector.load %arg5[%c0_184, %c0_185, %c144] : memref<2x1x512xf32, #tpu.memory_space<vmem>>, vector<1x1x256xf32>
      %390 = vector.shape_cast %389 : vector<1x1x256xf32> to vector<1x256xf32>
      %391 = vector.broadcast %387 : f32 to vector<1x256xf32>
      %392 = arith.mulf %390, %391 : vector<1x256xf32>
      %393 = arith.addf %386, %392 : vector<1x256xf32>
      %c1_186 = arith.constant 1 : index
      %c0_187 = arith.constant 0 : index
      %c144_188 = arith.constant 144 : index
      %394 = vector.load %arg5[%c1_186, %c0_187, %c144_188] : memref<2x1x512xf32, #tpu.memory_space<vmem>>, vector<1x1x256xf32>
      %395 = vector.shape_cast %394 : vector<1x1x256xf32> to vector<1x256xf32>
      %396 = vector.broadcast %388 : f32 to vector<1x256xf32>
      %397 = arith.mulf %395, %396 : vector<1x256xf32>
      %398 = arith.addf %393, %397 : vector<1x256xf32>
      %c38 = arith.constant 38 : index
      %399 = memref.load %arg3[%c38] : memref<98xf32, #tpu.memory_space<smem>>
      %c87 = arith.constant 87 : index
      %400 = memref.load %arg3[%c87] : memref<98xf32, #tpu.memory_space<smem>>
      %c0_189 = arith.constant 0 : index
      %c0_190 = arith.constant 0 : index
      %c160 = arith.constant 160 : index
      %401 = vector.load %arg5[%c0_189, %c0_190, %c160] : memref<2x1x512xf32, #tpu.memory_space<vmem>>, vector<1x1x256xf32>
      %402 = vector.shape_cast %401 : vector<1x1x256xf32> to vector<1x256xf32>
      %403 = vector.broadcast %399 : f32 to vector<1x256xf32>
      %404 = arith.mulf %402, %403 : vector<1x256xf32>
      %405 = arith.addf %398, %404 : vector<1x256xf32>
      %c1_191 = arith.constant 1 : index
      %c0_192 = arith.constant 0 : index
      %c160_193 = arith.constant 160 : index
      %406 = vector.load %arg5[%c1_191, %c0_192, %c160_193] : memref<2x1x512xf32, #tpu.memory_space<vmem>>, vector<1x1x256xf32>
      %407 = vector.shape_cast %406 : vector<1x1x256xf32> to vector<1x256xf32>
      %408 = vector.broadcast %400 : f32 to vector<1x256xf32>
      %409 = arith.mulf %407, %408 : vector<1x256xf32>
      %410 = arith.addf %405, %409 : vector<1x256xf32>
      %c45 = arith.constant 45 : index
      %411 = memref.load %arg3[%c45] : memref<98xf32, #tpu.memory_space<smem>>
      %c94_194 = arith.constant 94 : index
      %412 = memref.load %arg3[%c94_194] : memref<98xf32, #tpu.memory_space<smem>>
      %c0_195 = arith.constant 0 : index
      %c0_196 = arith.constant 0 : index
      %c176 = arith.constant 176 : index
      %413 = vector.load %arg5[%c0_195, %c0_196, %c176] : memref<2x1x512xf32, #tpu.memory_space<vmem>>, vector<1x1x256xf32>
      %414 = vector.shape_cast %413 : vector<1x1x256xf32> to vector<1x256xf32>
      %415 = vector.broadcast %411 : f32 to vector<1x256xf32>
      %416 = arith.mulf %414, %415 : vector<1x256xf32>
      %417 = arith.addf %410, %416 : vector<1x256xf32>
      %c1_197 = arith.constant 1 : index
      %c0_198 = arith.constant 0 : index
      %c176_199 = arith.constant 176 : index
      %418 = vector.load %arg5[%c1_197, %c0_198, %c176_199] : memref<2x1x512xf32, #tpu.memory_space<vmem>>, vector<1x1x256xf32>
      %419 = vector.shape_cast %418 : vector<1x1x256xf32> to vector<1x256xf32>
      %420 = vector.broadcast %412 : f32 to vector<1x256xf32>
      %421 = arith.mulf %419, %420 : vector<1x256xf32>
      %422 = arith.addf %417, %421 : vector<1x256xf32>
      %423 = arith.addf %337, %422 : vector<1x256xf32>
      %cst_200 = arith.constant 0.000000e+00 : f32
      %424 = vector.broadcast %cst_200 : f32 to vector<1x256xf32>
      %c4 = arith.constant 4 : index
      %425 = memref.load %arg3[%c4] : memref<98xf32, #tpu.memory_space<smem>>
      %c53 = arith.constant 53 : index
      %426 = memref.load %arg3[%c53] : memref<98xf32, #tpu.memory_space<smem>>
      %c0_201 = arith.constant 0 : index
      %c0_202 = arith.constant 0 : index
      %c81 = arith.constant 81 : index
      %427 = vector.load %arg5[%c0_201, %c0_202, %c81] : memref<2x1x512xf32, #tpu.memory_space<vmem>>, vector<1x1x256xf32>
      %428 = vector.shape_cast %427 : vector<1x1x256xf32> to vector<1x256xf32>
      %429 = vector.broadcast %425 : f32 to vector<1x256xf32>
      %430 = arith.mulf %428, %429 : vector<1x256xf32>
      %431 = arith.addf %424, %430 : vector<1x256xf32>
      %c1_203 = arith.constant 1 : index
      %c0_204 = arith.constant 0 : index
      %c81_205 = arith.constant 81 : index
      %432 = vector.load %arg5[%c1_203, %c0_204, %c81_205] : memref<2x1x512xf32, #tpu.memory_space<vmem>>, vector<1x1x256xf32>
      %433 = vector.shape_cast %432 : vector<1x1x256xf32> to vector<1x256xf32>
      %434 = vector.broadcast %426 : f32 to vector<1x256xf32>
      %435 = arith.mulf %433, %434 : vector<1x256xf32>
      %436 = arith.addf %431, %435 : vector<1x256xf32>
      %c11 = arith.constant 11 : index
      %437 = memref.load %arg3[%c11] : memref<98xf32, #tpu.memory_space<smem>>
      %c60 = arith.constant 60 : index
      %438 = memref.load %arg3[%c60] : memref<98xf32, #tpu.memory_space<smem>>
      %c0_206 = arith.constant 0 : index
      %c0_207 = arith.constant 0 : index
      %c97 = arith.constant 97 : index
      %439 = vector.load %arg5[%c0_206, %c0_207, %c97] : memref<2x1x512xf32, #tpu.memory_space<vmem>>, vector<1x1x256xf32>
      %440 = vector.shape_cast %439 : vector<1x1x256xf32> to vector<1x256xf32>
      %441 = vector.broadcast %437 : f32 to vector<1x256xf32>
      %442 = arith.mulf %440, %441 : vector<1x256xf32>
      %443 = arith.addf %436, %442 : vector<1x256xf32>
      %c1_208 = arith.constant 1 : index
      %c0_209 = arith.constant 0 : index
      %c97_210 = arith.constant 97 : index
      %444 = vector.load %arg5[%c1_208, %c0_209, %c97_210] : memref<2x1x512xf32, #tpu.memory_space<vmem>>, vector<1x1x256xf32>
      %445 = vector.shape_cast %444 : vector<1x1x256xf32> to vector<1x256xf32>
      %446 = vector.broadcast %438 : f32 to vector<1x256xf32>
      %447 = arith.mulf %445, %446 : vector<1x256xf32>
      %448 = arith.addf %443, %447 : vector<1x256xf32>
      %c18 = arith.constant 18 : index
      %449 = memref.load %arg3[%c18] : memref<98xf32, #tpu.memory_space<smem>>
      %c67 = arith.constant 67 : index
      %450 = memref.load %arg3[%c67] : memref<98xf32, #tpu.memory_space<smem>>
      %c0_211 = arith.constant 0 : index
      %c0_212 = arith.constant 0 : index
      %c113 = arith.constant 113 : index
      %451 = vector.load %arg5[%c0_211, %c0_212, %c113] : memref<2x1x512xf32, #tpu.memory_space<vmem>>, vector<1x1x256xf32>
      %452 = vector.shape_cast %451 : vector<1x1x256xf32> to vector<1x256xf32>
      %453 = vector.broadcast %449 : f32 to vector<1x256xf32>
      %454 = arith.mulf %452, %453 : vector<1x256xf32>
      %455 = arith.addf %448, %454 : vector<1x256xf32>
      %c1_213 = arith.constant 1 : index
      %c0_214 = arith.constant 0 : index
      %c113_215 = arith.constant 113 : index
      %456 = vector.load %arg5[%c1_213, %c0_214, %c113_215] : memref<2x1x512xf32, #tpu.memory_space<vmem>>, vector<1x1x256xf32>
      %457 = vector.shape_cast %456 : vector<1x1x256xf32> to vector<1x256xf32>
      %458 = vector.broadcast %450 : f32 to vector<1x256xf32>
      %459 = arith.mulf %457, %458 : vector<1x256xf32>
      %460 = arith.addf %455, %459 : vector<1x256xf32>
      %c25 = arith.constant 25 : index
      %461 = memref.load %arg3[%c25] : memref<98xf32, #tpu.memory_space<smem>>
      %c74 = arith.constant 74 : index
      %462 = memref.load %arg3[%c74] : memref<98xf32, #tpu.memory_space<smem>>
      %c0_216 = arith.constant 0 : index
      %c0_217 = arith.constant 0 : index
      %c129 = arith.constant 129 : index
      %463 = vector.load %arg5[%c0_216, %c0_217, %c129] : memref<2x1x512xf32, #tpu.memory_space<vmem>>, vector<1x1x256xf32>
      %464 = vector.shape_cast %463 : vector<1x1x256xf32> to vector<1x256xf32>
      %465 = vector.broadcast %461 : f32 to vector<1x256xf32>
      %466 = arith.mulf %464, %465 : vector<1x256xf32>
      %467 = arith.addf %460, %466 : vector<1x256xf32>
      %c1_218 = arith.constant 1 : index
      %c0_219 = arith.constant 0 : index
      %c129_220 = arith.constant 129 : index
      %468 = vector.load %arg5[%c1_218, %c0_219, %c129_220] : memref<2x1x512xf32, #tpu.memory_space<vmem>>, vector<1x1x256xf32>
      %469 = vector.shape_cast %468 : vector<1x1x256xf32> to vector<1x256xf32>
      %470 = vector.broadcast %462 : f32 to vector<1x256xf32>
      %471 = arith.mulf %469, %470 : vector<1x256xf32>
      %472 = arith.addf %467, %471 : vector<1x256xf32>
      %c32 = arith.constant 32 : index
      %473 = memref.load %arg3[%c32] : memref<98xf32, #tpu.memory_space<smem>>
      %c81_221 = arith.constant 81 : index
      %474 = memref.load %arg3[%c81_221] : memref<98xf32, #tpu.memory_space<smem>>
      %c0_222 = arith.constant 0 : index
      %c0_223 = arith.constant 0 : index
      %c145 = arith.constant 145 : index
      %475 = vector.load %arg5[%c0_222, %c0_223, %c145] : memref<2x1x512xf32, #tpu.memory_space<vmem>>, vector<1x1x256xf32>
      %476 = vector.shape_cast %475 : vector<1x1x256xf32> to vector<1x256xf32>
      %477 = vector.broadcast %473 : f32 to vector<1x256xf32>
      %478 = arith.mulf %476, %477 : vector<1x256xf32>
      %479 = arith.addf %472, %478 : vector<1x256xf32>
      %c1_224 = arith.constant 1 : index
      %c0_225 = arith.constant 0 : index
      %c145_226 = arith.constant 145 : index
      %480 = vector.load %arg5[%c1_224, %c0_225, %c145_226] : memref<2x1x512xf32, #tpu.memory_space<vmem>>, vector<1x1x256xf32>
      %481 = vector.shape_cast %480 : vector<1x1x256xf32> to vector<1x256xf32>
      %482 = vector.broadcast %474 : f32 to vector<1x256xf32>
      %483 = arith.mulf %481, %482 : vector<1x256xf32>
      %484 = arith.addf %479, %483 : vector<1x256xf32>
      %c39 = arith.constant 39 : index
      %485 = memref.load %arg3[%c39] : memref<98xf32, #tpu.memory_space<smem>>
      %c88 = arith.constant 88 : index
      %486 = memref.load %arg3[%c88] : memref<98xf32, #tpu.memory_space<smem>>
      %c0_227 = arith.constant 0 : index
      %c0_228 = arith.constant 0 : index
      %c161 = arith.constant 161 : index
      %487 = vector.load %arg5[%c0_227, %c0_228, %c161] : memref<2x1x512xf32, #tpu.memory_space<vmem>>, vector<1x1x256xf32>
      %488 = vector.shape_cast %487 : vector<1x1x256xf32> to vector<1x256xf32>
      %489 = vector.broadcast %485 : f32 to vector<1x256xf32>
      %490 = arith.mulf %488, %489 : vector<1x256xf32>
      %491 = arith.addf %484, %490 : vector<1x256xf32>
      %c1_229 = arith.constant 1 : index
      %c0_230 = arith.constant 0 : index
      %c161_231 = arith.constant 161 : index
      %492 = vector.load %arg5[%c1_229, %c0_230, %c161_231] : memref<2x1x512xf32, #tpu.memory_space<vmem>>, vector<1x1x256xf32>
      %493 = vector.shape_cast %492 : vector<1x1x256xf32> to vector<1x256xf32>
      %494 = vector.broadcast %486 : f32 to vector<1x256xf32>
      %495 = arith.mulf %493, %494 : vector<1x256xf32>
      %496 = arith.addf %491, %495 : vector<1x256xf32>
      %c46 = arith.constant 46 : index
      %497 = memref.load %arg3[%c46] : memref<98xf32, #tpu.memory_space<smem>>
      %c95_232 = arith.constant 95 : index
      %498 = memref.load %arg3[%c95_232] : memref<98xf32, #tpu.memory_space<smem>>
      %c0_233 = arith.constant 0 : index
      %c0_234 = arith.constant 0 : index
      %c177 = arith.constant 177 : index
      %499 = vector.load %arg5[%c0_233, %c0_234, %c177] : memref<2x1x512xf32, #tpu.memory_space<vmem>>, vector<1x1x256xf32>
      %500 = vector.shape_cast %499 : vector<1x1x256xf32> to vector<1x256xf32>
      %501 = vector.broadcast %497 : f32 to vector<1x256xf32>
      %502 = arith.mulf %500, %501 : vector<1x256xf32>
      %503 = arith.addf %496, %502 : vector<1x256xf32>
      %c1_235 = arith.constant 1 : index
      %c0_236 = arith.constant 0 : index
      %c177_237 = arith.constant 177 : index
      %504 = vector.load %arg5[%c1_235, %c0_236, %c177_237] : memref<2x1x512xf32, #tpu.memory_space<vmem>>, vector<1x1x256xf32>
      %505 = vector.shape_cast %504 : vector<1x1x256xf32> to vector<1x256xf32>
      %506 = vector.broadcast %498 : f32 to vector<1x256xf32>
      %507 = arith.mulf %505, %506 : vector<1x256xf32>
      %508 = arith.addf %503, %507 : vector<1x256xf32>
      %c1_i32_238 = arith.constant 1 : i32
      %509 = vector.broadcast %c1_i32_238 : i32 to vector<1x256xi32>
      %510 = arith.addi %45, %509 : vector<1x256xi32>
      %c0_i32_239 = arith.constant 0 : i32
      %511 = vector.broadcast %c0_i32_239 : i32 to vector<1x256xi32>
      %512 = arith.cmpi sge, %510, %511 : vector<1x256xi32>
      %c1_i32_240 = arith.constant 1 : i32
      %513 = vector.broadcast %c1_i32_240 : i32 to vector<1x256xi32>
      %514 = arith.addi %45, %513 : vector<1x256xi32>
      %c16_i32_241 = arith.constant 16 : i32
      %515 = vector.broadcast %c16_i32_241 : i32 to vector<1x256xi32>
      %516 = arith.cmpi slt, %514, %515 : vector<1x256xi32>
      %517 = arith.andi %512, %516 : vector<1x256xi1>
      %cst_242 = arith.constant 0.000000e+00 : f32
      %518 = vector.broadcast %cst_242 : f32 to vector<1x256xf32>
      %519 = arith.select %517, %508, %518 : vector<1x256xi1>, vector<1x256xf32>
      %520 = arith.addf %423, %519 : vector<1x256xf32>
      %cst_243 = arith.constant 0.000000e+00 : f32
      %521 = vector.broadcast %cst_243 : f32 to vector<1x256xf32>
      %c5 = arith.constant 5 : index
      %522 = memref.load %arg3[%c5] : memref<98xf32, #tpu.memory_space<smem>>
      %c54 = arith.constant 54 : index
      %523 = memref.load %arg3[%c54] : memref<98xf32, #tpu.memory_space<smem>>
      %c0_244 = arith.constant 0 : index
      %c0_245 = arith.constant 0 : index
      %c82 = arith.constant 82 : index
      %524 = vector.load %arg5[%c0_244, %c0_245, %c82] : memref<2x1x512xf32, #tpu.memory_space<vmem>>, vector<1x1x256xf32>
      %525 = vector.shape_cast %524 : vector<1x1x256xf32> to vector<1x256xf32>
      %526 = vector.broadcast %522 : f32 to vector<1x256xf32>
      %527 = arith.mulf %525, %526 : vector<1x256xf32>
      %528 = arith.addf %521, %527 : vector<1x256xf32>
      %c1_246 = arith.constant 1 : index
      %c0_247 = arith.constant 0 : index
      %c82_248 = arith.constant 82 : index
      %529 = vector.load %arg5[%c1_246, %c0_247, %c82_248] : memref<2x1x512xf32, #tpu.memory_space<vmem>>, vector<1x1x256xf32>
      %530 = vector.shape_cast %529 : vector<1x1x256xf32> to vector<1x256xf32>
      %531 = vector.broadcast %523 : f32 to vector<1x256xf32>
      %532 = arith.mulf %530, %531 : vector<1x256xf32>
      %533 = arith.addf %528, %532 : vector<1x256xf32>
      %c12 = arith.constant 12 : index
      %534 = memref.load %arg3[%c12] : memref<98xf32, #tpu.memory_space<smem>>
      %c61 = arith.constant 61 : index
      %535 = memref.load %arg3[%c61] : memref<98xf32, #tpu.memory_space<smem>>
      %c0_249 = arith.constant 0 : index
      %c0_250 = arith.constant 0 : index
      %c98 = arith.constant 98 : index
      %536 = vector.load %arg5[%c0_249, %c0_250, %c98] : memref<2x1x512xf32, #tpu.memory_space<vmem>>, vector<1x1x256xf32>
      %537 = vector.shape_cast %536 : vector<1x1x256xf32> to vector<1x256xf32>
      %538 = vector.broadcast %534 : f32 to vector<1x256xf32>
      %539 = arith.mulf %537, %538 : vector<1x256xf32>
      %540 = arith.addf %533, %539 : vector<1x256xf32>
      %c1_251 = arith.constant 1 : index
      %c0_252 = arith.constant 0 : index
      %c98_253 = arith.constant 98 : index
      %541 = vector.load %arg5[%c1_251, %c0_252, %c98_253] : memref<2x1x512xf32, #tpu.memory_space<vmem>>, vector<1x1x256xf32>
      %542 = vector.shape_cast %541 : vector<1x1x256xf32> to vector<1x256xf32>
      %543 = vector.broadcast %535 : f32 to vector<1x256xf32>
      %544 = arith.mulf %542, %543 : vector<1x256xf32>
      %545 = arith.addf %540, %544 : vector<1x256xf32>
      %c19 = arith.constant 19 : index
      %546 = memref.load %arg3[%c19] : memref<98xf32, #tpu.memory_space<smem>>
      %c68 = arith.constant 68 : index
      %547 = memref.load %arg3[%c68] : memref<98xf32, #tpu.memory_space<smem>>
      %c0_254 = arith.constant 0 : index
      %c0_255 = arith.constant 0 : index
      %c114 = arith.constant 114 : index
      %548 = vector.load %arg5[%c0_254, %c0_255, %c114] : memref<2x1x512xf32, #tpu.memory_space<vmem>>, vector<1x1x256xf32>
      %549 = vector.shape_cast %548 : vector<1x1x256xf32> to vector<1x256xf32>
      %550 = vector.broadcast %546 : f32 to vector<1x256xf32>
      %551 = arith.mulf %549, %550 : vector<1x256xf32>
      %552 = arith.addf %545, %551 : vector<1x256xf32>
      %c1_256 = arith.constant 1 : index
      %c0_257 = arith.constant 0 : index
      %c114_258 = arith.constant 114 : index
      %553 = vector.load %arg5[%c1_256, %c0_257, %c114_258] : memref<2x1x512xf32, #tpu.memory_space<vmem>>, vector<1x1x256xf32>
      %554 = vector.shape_cast %553 : vector<1x1x256xf32> to vector<1x256xf32>
      %555 = vector.broadcast %547 : f32 to vector<1x256xf32>
      %556 = arith.mulf %554, %555 : vector<1x256xf32>
      %557 = arith.addf %552, %556 : vector<1x256xf32>
      %c26 = arith.constant 26 : index
      %558 = memref.load %arg3[%c26] : memref<98xf32, #tpu.memory_space<smem>>
      %c75 = arith.constant 75 : index
      %559 = memref.load %arg3[%c75] : memref<98xf32, #tpu.memory_space<smem>>
      %c0_259 = arith.constant 0 : index
      %c0_260 = arith.constant 0 : index
      %c130 = arith.constant 130 : index
      %560 = vector.load %arg5[%c0_259, %c0_260, %c130] : memref<2x1x512xf32, #tpu.memory_space<vmem>>, vector<1x1x256xf32>
      %561 = vector.shape_cast %560 : vector<1x1x256xf32> to vector<1x256xf32>
      %562 = vector.broadcast %558 : f32 to vector<1x256xf32>
      %563 = arith.mulf %561, %562 : vector<1x256xf32>
      %564 = arith.addf %557, %563 : vector<1x256xf32>
      %c1_261 = arith.constant 1 : index
      %c0_262 = arith.constant 0 : index
      %c130_263 = arith.constant 130 : index
      %565 = vector.load %arg5[%c1_261, %c0_262, %c130_263] : memref<2x1x512xf32, #tpu.memory_space<vmem>>, vector<1x1x256xf32>
      %566 = vector.shape_cast %565 : vector<1x1x256xf32> to vector<1x256xf32>
      %567 = vector.broadcast %559 : f32 to vector<1x256xf32>
      %568 = arith.mulf %566, %567 : vector<1x256xf32>
      %569 = arith.addf %564, %568 : vector<1x256xf32>
      %c33 = arith.constant 33 : index
      %570 = memref.load %arg3[%c33] : memref<98xf32, #tpu.memory_space<smem>>
      %c82_264 = arith.constant 82 : index
      %571 = memref.load %arg3[%c82_264] : memref<98xf32, #tpu.memory_space<smem>>
      %c0_265 = arith.constant 0 : index
      %c0_266 = arith.constant 0 : index
      %c146 = arith.constant 146 : index
      %572 = vector.load %arg5[%c0_265, %c0_266, %c146] : memref<2x1x512xf32, #tpu.memory_space<vmem>>, vector<1x1x256xf32>
      %573 = vector.shape_cast %572 : vector<1x1x256xf32> to vector<1x256xf32>
      %574 = vector.broadcast %570 : f32 to vector<1x256xf32>
      %575 = arith.mulf %573, %574 : vector<1x256xf32>
      %576 = arith.addf %569, %575 : vector<1x256xf32>
      %c1_267 = arith.constant 1 : index
      %c0_268 = arith.constant 0 : index
      %c146_269 = arith.constant 146 : index
      %577 = vector.load %arg5[%c1_267, %c0_268, %c146_269] : memref<2x1x512xf32, #tpu.memory_space<vmem>>, vector<1x1x256xf32>
      %578 = vector.shape_cast %577 : vector<1x1x256xf32> to vector<1x256xf32>
      %579 = vector.broadcast %571 : f32 to vector<1x256xf32>
      %580 = arith.mulf %578, %579 : vector<1x256xf32>
      %581 = arith.addf %576, %580 : vector<1x256xf32>
      %c40 = arith.constant 40 : index
      %582 = memref.load %arg3[%c40] : memref<98xf32, #tpu.memory_space<smem>>
      %c89 = arith.constant 89 : index
      %583 = memref.load %arg3[%c89] : memref<98xf32, #tpu.memory_space<smem>>
      %c0_270 = arith.constant 0 : index
      %c0_271 = arith.constant 0 : index
      %c162 = arith.constant 162 : index
      %584 = vector.load %arg5[%c0_270, %c0_271, %c162] : memref<2x1x512xf32, #tpu.memory_space<vmem>>, vector<1x1x256xf32>
      %585 = vector.shape_cast %584 : vector<1x1x256xf32> to vector<1x256xf32>
      %586 = vector.broadcast %582 : f32 to vector<1x256xf32>
      %587 = arith.mulf %585, %586 : vector<1x256xf32>
      %588 = arith.addf %581, %587 : vector<1x256xf32>
      %c1_272 = arith.constant 1 : index
      %c0_273 = arith.constant 0 : index
      %c162_274 = arith.constant 162 : index
      %589 = vector.load %arg5[%c1_272, %c0_273, %c162_274] : memref<2x1x512xf32, #tpu.memory_space<vmem>>, vector<1x1x256xf32>
      %590 = vector.shape_cast %589 : vector<1x1x256xf32> to vector<1x256xf32>
      %591 = vector.broadcast %583 : f32 to vector<1x256xf32>
      %592 = arith.mulf %590, %591 : vector<1x256xf32>
      %593 = arith.addf %588, %592 : vector<1x256xf32>
      %c47 = arith.constant 47 : index
      %594 = memref.load %arg3[%c47] : memref<98xf32, #tpu.memory_space<smem>>
      %c96_275 = arith.constant 96 : index
      %595 = memref.load %arg3[%c96_275] : memref<98xf32, #tpu.memory_space<smem>>
      %c0_276 = arith.constant 0 : index
      %c0_277 = arith.constant 0 : index
      %c178 = arith.constant 178 : index
      %596 = vector.load %arg5[%c0_276, %c0_277, %c178] : memref<2x1x512xf32, #tpu.memory_space<vmem>>, vector<1x1x256xf32>
      %597 = vector.shape_cast %596 : vector<1x1x256xf32> to vector<1x256xf32>
      %598 = vector.broadcast %594 : f32 to vector<1x256xf32>
      %599 = arith.mulf %597, %598 : vector<1x256xf32>
      %600 = arith.addf %593, %599 : vector<1x256xf32>
      %c1_278 = arith.constant 1 : index
      %c0_279 = arith.constant 0 : index
      %c178_280 = arith.constant 178 : index
      %601 = vector.load %arg5[%c1_278, %c0_279, %c178_280] : memref<2x1x512xf32, #tpu.memory_space<vmem>>, vector<1x1x256xf32>
      %602 = vector.shape_cast %601 : vector<1x1x256xf32> to vector<1x256xf32>
      %603 = vector.broadcast %595 : f32 to vector<1x256xf32>
      %604 = arith.mulf %602, %603 : vector<1x256xf32>
      %605 = arith.addf %600, %604 : vector<1x256xf32>
      %c2_i32 = arith.constant 2 : i32
      %606 = vector.broadcast %c2_i32 : i32 to vector<1x256xi32>
      %607 = arith.addi %45, %606 : vector<1x256xi32>
      %c0_i32_281 = arith.constant 0 : i32
      %608 = vector.broadcast %c0_i32_281 : i32 to vector<1x256xi32>
      %609 = arith.cmpi sge, %607, %608 : vector<1x256xi32>
      %c2_i32_282 = arith.constant 2 : i32
      %610 = vector.broadcast %c2_i32_282 : i32 to vector<1x256xi32>
      %611 = arith.addi %45, %610 : vector<1x256xi32>
      %c16_i32_283 = arith.constant 16 : i32
      %612 = vector.broadcast %c16_i32_283 : i32 to vector<1x256xi32>
      %613 = arith.cmpi slt, %611, %612 : vector<1x256xi32>
      %614 = arith.andi %609, %613 : vector<1x256xi1>
      %cst_284 = arith.constant 0.000000e+00 : f32
      %615 = vector.broadcast %cst_284 : f32 to vector<1x256xf32>
      %616 = arith.select %614, %605, %615 : vector<1x256xi1>, vector<1x256xf32>
      %617 = arith.addf %520, %616 : vector<1x256xf32>
      %cst_285 = arith.constant 0.000000e+00 : f32
      %618 = vector.broadcast %cst_285 : f32 to vector<1x256xf32>
      %c6 = arith.constant 6 : index
      %619 = memref.load %arg3[%c6] : memref<98xf32, #tpu.memory_space<smem>>
      %c55 = arith.constant 55 : index
      %620 = memref.load %arg3[%c55] : memref<98xf32, #tpu.memory_space<smem>>
      %c0_286 = arith.constant 0 : index
      %c0_287 = arith.constant 0 : index
      %c83 = arith.constant 83 : index
      %621 = vector.load %arg5[%c0_286, %c0_287, %c83] : memref<2x1x512xf32, #tpu.memory_space<vmem>>, vector<1x1x256xf32>
      %622 = vector.shape_cast %621 : vector<1x1x256xf32> to vector<1x256xf32>
      %623 = vector.broadcast %619 : f32 to vector<1x256xf32>
      %624 = arith.mulf %622, %623 : vector<1x256xf32>
      %625 = arith.addf %618, %624 : vector<1x256xf32>
      %c1_288 = arith.constant 1 : index
      %c0_289 = arith.constant 0 : index
      %c83_290 = arith.constant 83 : index
      %626 = vector.load %arg5[%c1_288, %c0_289, %c83_290] : memref<2x1x512xf32, #tpu.memory_space<vmem>>, vector<1x1x256xf32>
      %627 = vector.shape_cast %626 : vector<1x1x256xf32> to vector<1x256xf32>
      %628 = vector.broadcast %620 : f32 to vector<1x256xf32>
      %629 = arith.mulf %627, %628 : vector<1x256xf32>
      %630 = arith.addf %625, %629 : vector<1x256xf32>
      %c13 = arith.constant 13 : index
      %631 = memref.load %arg3[%c13] : memref<98xf32, #tpu.memory_space<smem>>
      %c62 = arith.constant 62 : index
      %632 = memref.load %arg3[%c62] : memref<98xf32, #tpu.memory_space<smem>>
      %c0_291 = arith.constant 0 : index
      %c0_292 = arith.constant 0 : index
      %c99 = arith.constant 99 : index
      %633 = vector.load %arg5[%c0_291, %c0_292, %c99] : memref<2x1x512xf32, #tpu.memory_space<vmem>>, vector<1x1x256xf32>
      %634 = vector.shape_cast %633 : vector<1x1x256xf32> to vector<1x256xf32>
      %635 = vector.broadcast %631 : f32 to vector<1x256xf32>
      %636 = arith.mulf %634, %635 : vector<1x256xf32>
      %637 = arith.addf %630, %636 : vector<1x256xf32>
      %c1_293 = arith.constant 1 : index
      %c0_294 = arith.constant 0 : index
      %c99_295 = arith.constant 99 : index
      %638 = vector.load %arg5[%c1_293, %c0_294, %c99_295] : memref<2x1x512xf32, #tpu.memory_space<vmem>>, vector<1x1x256xf32>
      %639 = vector.shape_cast %638 : vector<1x1x256xf32> to vector<1x256xf32>
      %640 = vector.broadcast %632 : f32 to vector<1x256xf32>
      %641 = arith.mulf %639, %640 : vector<1x256xf32>
      %642 = arith.addf %637, %641 : vector<1x256xf32>
      %c20 = arith.constant 20 : index
      %643 = memref.load %arg3[%c20] : memref<98xf32, #tpu.memory_space<smem>>
      %c69 = arith.constant 69 : index
      %644 = memref.load %arg3[%c69] : memref<98xf32, #tpu.memory_space<smem>>
      %c0_296 = arith.constant 0 : index
      %c0_297 = arith.constant 0 : index
      %c115 = arith.constant 115 : index
      %645 = vector.load %arg5[%c0_296, %c0_297, %c115] : memref<2x1x512xf32, #tpu.memory_space<vmem>>, vector<1x1x256xf32>
      %646 = vector.shape_cast %645 : vector<1x1x256xf32> to vector<1x256xf32>
      %647 = vector.broadcast %643 : f32 to vector<1x256xf32>
      %648 = arith.mulf %646, %647 : vector<1x256xf32>
      %649 = arith.addf %642, %648 : vector<1x256xf32>
      %c1_298 = arith.constant 1 : index
      %c0_299 = arith.constant 0 : index
      %c115_300 = arith.constant 115 : index
      %650 = vector.load %arg5[%c1_298, %c0_299, %c115_300] : memref<2x1x512xf32, #tpu.memory_space<vmem>>, vector<1x1x256xf32>
      %651 = vector.shape_cast %650 : vector<1x1x256xf32> to vector<1x256xf32>
      %652 = vector.broadcast %644 : f32 to vector<1x256xf32>
      %653 = arith.mulf %651, %652 : vector<1x256xf32>
      %654 = arith.addf %649, %653 : vector<1x256xf32>
      %c27 = arith.constant 27 : index
      %655 = memref.load %arg3[%c27] : memref<98xf32, #tpu.memory_space<smem>>
      %c76 = arith.constant 76 : index
      %656 = memref.load %arg3[%c76] : memref<98xf32, #tpu.memory_space<smem>>
      %c0_301 = arith.constant 0 : index
      %c0_302 = arith.constant 0 : index
      %c131 = arith.constant 131 : index
      %657 = vector.load %arg5[%c0_301, %c0_302, %c131] : memref<2x1x512xf32, #tpu.memory_space<vmem>>, vector<1x1x256xf32>
      %658 = vector.shape_cast %657 : vector<1x1x256xf32> to vector<1x256xf32>
      %659 = vector.broadcast %655 : f32 to vector<1x256xf32>
      %660 = arith.mulf %658, %659 : vector<1x256xf32>
      %661 = arith.addf %654, %660 : vector<1x256xf32>
      %c1_303 = arith.constant 1 : index
      %c0_304 = arith.constant 0 : index
      %c131_305 = arith.constant 131 : index
      %662 = vector.load %arg5[%c1_303, %c0_304, %c131_305] : memref<2x1x512xf32, #tpu.memory_space<vmem>>, vector<1x1x256xf32>
      %663 = vector.shape_cast %662 : vector<1x1x256xf32> to vector<1x256xf32>
      %664 = vector.broadcast %656 : f32 to vector<1x256xf32>
      %665 = arith.mulf %663, %664 : vector<1x256xf32>
      %666 = arith.addf %661, %665 : vector<1x256xf32>
      %c34 = arith.constant 34 : index
      %667 = memref.load %arg3[%c34] : memref<98xf32, #tpu.memory_space<smem>>
      %c83_306 = arith.constant 83 : index
      %668 = memref.load %arg3[%c83_306] : memref<98xf32, #tpu.memory_space<smem>>
      %c0_307 = arith.constant 0 : index
      %c0_308 = arith.constant 0 : index
      %c147 = arith.constant 147 : index
      %669 = vector.load %arg5[%c0_307, %c0_308, %c147] : memref<2x1x512xf32, #tpu.memory_space<vmem>>, vector<1x1x256xf32>
      %670 = vector.shape_cast %669 : vector<1x1x256xf32> to vector<1x256xf32>
      %671 = vector.broadcast %667 : f32 to vector<1x256xf32>
      %672 = arith.mulf %670, %671 : vector<1x256xf32>
      %673 = arith.addf %666, %672 : vector<1x256xf32>
      %c1_309 = arith.constant 1 : index
      %c0_310 = arith.constant 0 : index
      %c147_311 = arith.constant 147 : index
      %674 = vector.load %arg5[%c1_309, %c0_310, %c147_311] : memref<2x1x512xf32, #tpu.memory_space<vmem>>, vector<1x1x256xf32>
      %675 = vector.shape_cast %674 : vector<1x1x256xf32> to vector<1x256xf32>
      %676 = vector.broadcast %668 : f32 to vector<1x256xf32>
      %677 = arith.mulf %675, %676 : vector<1x256xf32>
      %678 = arith.addf %673, %677 : vector<1x256xf32>
      %c41 = arith.constant 41 : index
      %679 = memref.load %arg3[%c41] : memref<98xf32, #tpu.memory_space<smem>>
      %c90 = arith.constant 90 : index
      %680 = memref.load %arg3[%c90] : memref<98xf32, #tpu.memory_space<smem>>
      %c0_312 = arith.constant 0 : index
      %c0_313 = arith.constant 0 : index
      %c163 = arith.constant 163 : index
      %681 = vector.load %arg5[%c0_312, %c0_313, %c163] : memref<2x1x512xf32, #tpu.memory_space<vmem>>, vector<1x1x256xf32>
      %682 = vector.shape_cast %681 : vector<1x1x256xf32> to vector<1x256xf32>
      %683 = vector.broadcast %679 : f32 to vector<1x256xf32>
      %684 = arith.mulf %682, %683 : vector<1x256xf32>
      %685 = arith.addf %678, %684 : vector<1x256xf32>
      %c1_314 = arith.constant 1 : index
      %c0_315 = arith.constant 0 : index
      %c163_316 = arith.constant 163 : index
      %686 = vector.load %arg5[%c1_314, %c0_315, %c163_316] : memref<2x1x512xf32, #tpu.memory_space<vmem>>, vector<1x1x256xf32>
      %687 = vector.shape_cast %686 : vector<1x1x256xf32> to vector<1x256xf32>
      %688 = vector.broadcast %680 : f32 to vector<1x256xf32>
      %689 = arith.mulf %687, %688 : vector<1x256xf32>
      %690 = arith.addf %685, %689 : vector<1x256xf32>
      %c48 = arith.constant 48 : index
      %691 = memref.load %arg3[%c48] : memref<98xf32, #tpu.memory_space<smem>>
      %c97_317 = arith.constant 97 : index
      %692 = memref.load %arg3[%c97_317] : memref<98xf32, #tpu.memory_space<smem>>
      %c0_318 = arith.constant 0 : index
      %c0_319 = arith.constant 0 : index
      %c179 = arith.constant 179 : index
      %693 = vector.load %arg5[%c0_318, %c0_319, %c179] : memref<2x1x512xf32, #tpu.memory_space<vmem>>, vector<1x1x256xf32>
      %694 = vector.shape_cast %693 : vector<1x1x256xf32> to vector<1x256xf32>
      %695 = vector.broadcast %691 : f32 to vector<1x256xf32>
      %696 = arith.mulf %694, %695 : vector<1x256xf32>
      %697 = arith.addf %690, %696 : vector<1x256xf32>
      %c1_320 = arith.constant 1 : index
      %c0_321 = arith.constant 0 : index
      %c179_322 = arith.constant 179 : index
      %698 = vector.load %arg5[%c1_320, %c0_321, %c179_322] : memref<2x1x512xf32, #tpu.memory_space<vmem>>, vector<1x1x256xf32>
      %699 = vector.shape_cast %698 : vector<1x1x256xf32> to vector<1x256xf32>
      %700 = vector.broadcast %692 : f32 to vector<1x256xf32>
      %701 = arith.mulf %699, %700 : vector<1x256xf32>
      %702 = arith.addf %697, %701 : vector<1x256xf32>
      %c3_i32 = arith.constant 3 : i32
      %703 = vector.broadcast %c3_i32 : i32 to vector<1x256xi32>
      %704 = arith.addi %45, %703 : vector<1x256xi32>
      %c0_i32_323 = arith.constant 0 : i32
      %705 = vector.broadcast %c0_i32_323 : i32 to vector<1x256xi32>
      %706 = arith.cmpi sge, %704, %705 : vector<1x256xi32>
      %c3_i32_324 = arith.constant 3 : i32
      %707 = vector.broadcast %c3_i32_324 : i32 to vector<1x256xi32>
      %708 = arith.addi %45, %707 : vector<1x256xi32>
      %c16_i32_325 = arith.constant 16 : i32
      %709 = vector.broadcast %c16_i32_325 : i32 to vector<1x256xi32>
      %710 = arith.cmpi slt, %708, %709 : vector<1x256xi32>
      %711 = arith.andi %706, %710 : vector<1x256xi1>
      %cst_326 = arith.constant 0.000000e+00 : f32
      %712 = vector.broadcast %cst_326 : f32 to vector<1x256xf32>
      %713 = arith.select %711, %702, %712 : vector<1x256xi1>, vector<1x256xf32>
      %714 = arith.addf %617, %713 : vector<1x256xf32>
      %715 = arith.negf %714 : vector<1x256xf32>
      %716 = math.exp %715 : vector<1x256xf32>
      %cst_327 = arith.constant 1.000000e+00 : f32
      %717 = vector.broadcast %cst_327 : f32 to vector<1x256xf32>
      %718 = arith.addf %717, %716 : vector<1x256xf32>
      %719 = arith.divf %717, %718 : vector<1x256xf32>
      %720 = vector.shape_cast %719 : vector<1x256xf32> to vector<1x1x256xf32>
      %c0_328 = arith.constant 0 : index
      %c0_329 = arith.constant 0 : index
      %c0_330 = arith.constant 0 : index
      %721 = vector.load %arg4[%c0_328, %c0_329, %c0_330] : memref<1x1x256xf32, #tpu.memory_space<vmem>>, vector<1x1x256xf32>
      tpu.vector_store %arg4[%c0_328, %c0_329, %c0_330], %720 {strides = array<i32>} : memref<1x1x256xf32, #tpu.memory_space<vmem>>, vector<1x1x256xf32>,
    } else {
    }
    return
  }
  func.func @transform_0(%arg0: i32, %arg1: i32) -> (i32, i32, i32) {
    %c0_i32 = arith.constant 0 : i32
    %c0_i32_0 = arith.constant 0 : i32
    return %arg0, %arg1, %c0_i32 : i32, i32, i32
  }
  func.func @transform_1(%arg0: i32, %arg1: i32) -> i32 {
    %c0_i32 = arith.constant 0 : i32
    %c0_i32_0 = arith.constant 0 : i32
    return %c0_i32 : i32
  }
  func.func @transform_2(%arg0: i32, %arg1: i32) -> (i32, i32, i32) {
    %c0_i32 = arith.constant 0 : i32
    %c0_i32_0 = arith.constant 0 : i32
    %c0_i32_1 = arith.constant 0 : i32
    return %arg0, %c0_i32, %c0_i32_0 : i32, i32, i32
  }
}

</mosaic_0001>

<llo_original>
// kernel: spatial_attention.1
$region0: #{spatial_attention.1}
  #allocation0 [shape = 'u32[]', space=smem, size = 0x4, offset = 0x4, fixed_abs, tag = 'smem constant byte address 0x4 - core index']
  #allocation1 [shape = 'u32[144,128]{1,0:T(1,128)}', space=vmem, size = 0x12000, scoped, tag = 'internal scratch']
  #allocation2 [shape = 'f32[2,1,512]{2,1,0:T(1,128)}', space=vmem, size = 0x1000, scoped, tag = 'scratch operand']
  #allocation3 [shape = 'f32[1,256]{1,0:T(1,128)}', space=vmem, size = 0x400, scoped, tag = 'scratch operand']
  #allocation4 [shape = 'f32[1,256]{1,0:T(1,128)}', space=vmem, size = 0x400, scoped, tag = 'scratch operand']
  %s0 = inlined_call_operand.hbm [shape: f32[2,4,256], index: 0, kind: input, shape index: {}]
  %s1 = inlined_call_operand.hbm [shape: f32[98], index: 1, kind: input, shape index: {}]
  %s2 = inlined_call_operand.hbm [shape: f32[2,1,256], index: 2, kind: output, shape index: {}]
  %s3 = sld [smem:[#allocation0]]
  $region57: #{spatial_attention.1} parent=0
    _
  %s5 = ssub.s32 1, %s3
  %s6 = scalar_select 0, %s5, %s3
  $region1: #{spatial_attention.1} parent=0
    #allocation5 [shape = 'u8[8192]{0}', space=vmem, size = 0x2000, scoped, tag = 'input window, operand 0']
    #allocation6 [shape = 's32[2]{0}', space=sflag, size = 0x8, scoped, tag = 'scoped memory for spatial_attention.1']
    #allocation7 [shape = 's32[2]{0}', space=sflag, size = 0x8, scoped, tag = 'scoped memory for spatial_attention.1']
    #allocation8 [shape = 's32[2]{0}', space=sflag, size = 0x8, scoped, tag = 'scoped memory for spatial_attention.1']
    #allocation9 [shape = 'u8[512]{0}', space=smem, size = 0x200, scoped, tag = 'input window, operand 1, single buffered']
    #allocation10 [shape = 'u8[2048]{0}', space=vmem, size = 0x800, scoped, tag = 'output window, operand 0']
    %7 = vsyncpa [#allocation6], 0
    %s8 = scalar_lea.sflag [#allocation6], 1
    %9 = vsyncpa %s8, 0
    %10 = vsyncpa [#allocation8], 0
    %11 = vsyncpa [#allocation7], 0
    %s12 = scalar_lea.sflag [#allocation7], 1
    %13 = vsyncpa %s12, 0
    loop: start=0, step=1, limit=4
    $region2: #{spatial_attention.1} parent=1 // loop_pre_header
      _
    $region3: #{spatial_attention.1} parent=1 // loop_header
      %s15 = sphi 0, %s19
      %p16 = scmp.ge.s32.totalorder %s15, 4
      %s22 = sphi 0, %s34
      %s23 = sphi 0, %s30
      %s24 = sphi 0, %s22
      %s25 = sphi 0, %s23
      %s26 = sphi 0, %s24
      %s27 = sphi 0, %s25
      %s39 = sphi 0, %s41
      %s42 = sphi 0, %s39
      %s43 = sphi 0, %s42
      %s59 = sphi 0, %s43
      %s63 = sphi 0, %s63
      %s65 = sphi 0, %s63
      %s66 = sphi 0, %s65
      %s80 = sphi 0, %s66
      %s86 = sphi 0, %s88
      %s89 = sphi 0, %s86
      %s90 = sphi 0, %s89
      %s106 = sphi 0, %s90
    $region4: #{spatial_attention.1} parent=1 // loop_header_branch
      %18 = sbr.rel (%p16) target = $region8
    $region5: #{spatial_attention.1} parent=1 // loop_body
      %s20 = ssub.s32 %s15, 1
      %s21 = ssub.s32 %s15, 2
      %s28 = sadd.s32 1, %s23
      %p29 = scmp.ge.s32.totalorder %s28, 1
      %s30 = scalar_select %p29, 0, %s28
      %s31 = sadd.s32 1, %s22
      %s32 = scalar_select %p29, %s31, %s22
      %p33 = scmp.ge.s32.totalorder %s32, 2
      %s34 = scalar_select %p33, 0, %s32
      %s35 = ssub.s32 %s22, %s34
      %s36 = ssub.s32 %s23, %s30
      %s37 = sor.u32 %s35, %s36
      %p38 = scmp.eq.s32.totalorder %s37, 0
      %s40 = sadd.s32 %s39, 1
      %s41 = scalar_select %p38, %s39, %s40
      %p44 = pneg %p38
      %p45 = scmp.eq.s32.totalorder %s15, 1
      %p46 = por %p44, %p45
      %p47 = scmp.ne.s32.totalorder %s39, %s42
      %p48 = scmp.eq.s32.totalorder %s15, 0
      %p49 = por %p47, %p48
      %p50 = scmp.ne.s32.totalorder %s39, %s42
      %p51 = scmp.eq.s32.totalorder %s20, 1
      %p52 = por %p50, %p51
      %p53 = scmp.ne.s32.totalorder %s42, %s43
      %p54 = scmp.eq.s32.totalorder %s20, 0
      %p55 = por %p53, %p54
      %p56 = scmp.ne.s32.totalorder %s42, %s43
      %p57 = scmp.eq.s32.totalorder %s21, 1
      %p58 = por %p56, %p57
      %p60 = scmp.ne.s32.totalorder %s43, %s59
      %p61 = scmp.eq.s32.totalorder %s21, 0
      %p62 = por %p60, %p61
      %s64 = sadd.s32 %s63, 1
      %p67 = scmp.eq.s32.totalorder %s15, 1
      %p68 = scmp.ne.s32.totalorder %s63, %s65
      %p69 = scmp.eq.s32.totalorder %s15, 0
      %p70 = por %p68, %p69
      %p71 = scmp.ne.s32.totalorder %s63, %s65
      %p72 = scmp.eq.s32.totalorder %s20, 1
      %p73 = por %p71, %p72
      %p74 = scmp.ne.s32.totalorder %s65, %s66
      %p75 = scmp.eq.s32.totalorder %s20, 0
      %p76 = por %p74, %p75
      %p77 = scmp.ne.s32.totalorder %s65, %s66
      %p78 = scmp.eq.s32.totalorder %s21, 1
      %p79 = por %p77, %p78
      %p81 = scmp.ne.s32.totalorder %s66, %s80
      %p82 = scmp.eq.s32.totalorder %s21, 0
      %p83 = por %p81, %p82
      %s84 = ssub.s32 %s22, %s34
      %p85 = scmp.eq.s32.totalorder %s84, 0
      %s87 = sadd.s32 %s86, 1
      %s88 = scalar_select %p85, %s86, %s87
      %p91 = pneg %p85
      %p92 = scmp.eq.s32.totalorder %s15, 1
      %p93 = por %p91, %p92
      %p94 = scmp.ne.s32.totalorder %s86, %s89
      %p95 = scmp.eq.s32.totalorder %s15, 0
      %p96 = por %p94, %p95
      %p97 = scmp.ne.s32.totalorder %s86, %s89
      %p98 = scmp.eq.s32.totalorder %s20, 1
      %p99 = por %p97, %p98
      %p100 = scmp.ne.s32.totalorder %s89, %s90
      %p101 = scmp.eq.s32.totalorder %s20, 0
      %p102 = por %p100, %p101
      %p103 = scmp.ne.s32.totalorder %s89, %s90
      %p104 = scmp.eq.s32.totalorder %s21, 1
      %p105 = por %p103, %p104
      %p107 = scmp.ne.s32.totalorder %s90, %s106
      %p108 = scmp.eq.s32.totalorder %s21, 0
      %p109 = por %p107, %p108
      %p110 = scmp.le.s32.totalorder 1, %s15
      %p111 = scmp.lt.s32.totalorder %s15, 3
      %p112 = pnand %p110, %p111
      %p113 = pneg %p112
      // Predicated region
      $region9: #{spatial_attention.1} parent=5 // pred_check
        _
      $region10: #{spatial_attention.1} parent=5 // pred_check_branch
        %115 = sbr.rel (%p112) target = $region12
      $region11: #{spatial_attention.1} parent=5 // pred_region
        %s116 = ssub.s32 %s15, 1
        // Predicated region
        $region13: #{spatial_attention.1} parent=11 // pred_check
          %p117 = pneg %p76
        $region14: #{spatial_attention.1} parent=11 // pred_check_branch
          %119 = sbr.rel (%p117) target = $region16
        $region15: #{spatial_attention.1} parent=11 // pred_region
          %s121 = ssub.s32 16, 16
          %122 = vsyncadd [#allocation8], %s121
          %125 = dma.hbm_to_smem %s1, 16, [#allocation9], [#allocation8]
        $region16: #{spatial_attention.1} parent=11 // pred_fallthru
          _
      $region12: #{spatial_attention.1} parent=5 // pred_fallthru
        _
      %p126 = scmp.lt.s32.totalorder %s15, 2
      // Predicated region
      $region17: #{spatial_attention.1} parent=5 // pred_check
        %p127 = pneg %p126
      $region18: #{spatial_attention.1} parent=5 // pred_check_branch
        %129 = sbr.rel (%p127) target = $region20
      $region19: #{spatial_attention.1} parent=5 // pred_region
        // Predicated region
        $region21: #{spatial_attention.1} parent=19 // pred_check
          %p130 = pneg %p49
        $region22: #{spatial_attention.1} parent=19 // pred_check_branch
          %132 = sbr.rel (%p130) target = $region24
        $region23: #{spatial_attention.1} parent=19 // pred_region
          %s133 = sand.u32 %s39, 1
          %s134 = scalar_lea.sflag [#allocation6], %s133
          %s135 = sand.u32 %s39, 1
          %s136 = smul.addr %s135, 8
          %s137 = scalar_lea.vmem [#allocation5], %s136
          %s139 = ssub.s32 128, 128
          %140 = vsyncadd %s134, %s139
          %s141 = smul.addr %s23, 2
          %s142 = smul.addr %s22, 2
          %s143 = sadd.s32 %s141, %s142
          %s144 = smul.addr %s143, 64
          %s145 = scalar_lea.hbm %s0, %s144
          %s147 = sshll.u32 %s137, 4
          %s148 = int_to_ptr.vmem [resolvable:$true] %s147
          %150 = dma.hbm_to_vmem [thread:$0]  %s145, 128, %s148, %s134
        $region24: #{spatial_attention.1} parent=19 // pred_fallthru
          _
      $region20: #{spatial_attention.1} parent=5 // pred_fallthru
        _
      %p151 = scmp.le.s32.totalorder 1, %s15
      %p152 = scmp.lt.s32.totalorder %s15, 3
      %p153 = pnand %p151, %p152
      %p154 = pneg %p153
      // Predicated region
      $region25: #{spatial_attention.1} parent=5 // pred_check
        _
      $region26: #{spatial_attention.1} parent=5 // pred_check_branch
        %156 = sbr.rel (%p153) target = $region28
      $region27: #{spatial_attention.1} parent=5 // pred_region
        %s157 = ssub.s32 %s15, 1
        %s158 = sand.u32 %s42, 1
        %s159 = scalar_lea.sflag [#allocation6], %s158
        %s160 = sand.u32 %s42, 1
        %s161 = smul.addr %s160, 8
        %s162 = scalar_lea.vmem [#allocation5], %s161
        // Predicated region
        $region29: #{spatial_attention.1} parent=27 // pred_check
          %p163 = pneg %p55
        $region30: #{spatial_attention.1} parent=27 // pred_check_branch
          %165 = sbr.rel (%p163) target = $region32
        $region31: #{spatial_attention.1} parent=27 // pred_region
          %166 = dma.done %s159, 128
        $region32: #{spatial_attention.1} parent=27 // pred_fallthru
          _
        // Predicated region
        $region33: #{spatial_attention.1} parent=27 // pred_check
          %p167 = pneg %p76
        $region34: #{spatial_attention.1} parent=27 // pred_check_branch
          %169 = sbr.rel (%p167) target = $region36
        $region35: #{spatial_attention.1} parent=27 // pred_region
          %170 = dma.done [#allocation8], 16
        $region36: #{spatial_attention.1} parent=27 // pred_fallthru
          _
        %171 = sfence
        %s172 = sand.u32 %s42, 1
        %s173 = scalar_lea.sflag [#allocation6], %s172
        %s174 = sand.u32 %s42, 1
        %s175 = smul.addr %s174, 8
        %s176 = scalar_lea.vmem [#allocation5], %s175
        %p177 = pneg %p55
        %p178 = pneg %p52
        %p179 = pneg %p76
        %p180 = pneg %p73
        %p181 = pneg %p102
        %p182 = pneg %p99
        %s183 = sand.u32 %s89, 1
        %s184 = scalar_lea.sflag [#allocation7], %s183
        %s185 = sand.u32 %s89, 1
        %s186 = smul.addr %s185, 2
        %s187 = scalar_lea.vmem [#allocation10], %s186
        %p188 = scmp.eq.s32.totalorder %s25, 0
        // Predicated region
        $region37: #{spatial_attention.1} parent=27 // pred_check
          %p189 = pneg %p188
        $region38: #{spatial_attention.1} parent=27 // pred_check_branch
          %191 = sbr.rel (%p189) target = $region40
        $region39: #{spatial_attention.1} parent=27 // pred_region
          %v192 = vlaneseq
          %vm193 = vcmp.ge.s32.totalorder %v192, 0
          %vm194 = vcmp.lt.s32.totalorder %v192, 256
          %vm195 = vmand %vm193, %vm194
          %196 = vst.msk [vmem:[#allocation3] sm:$0x3] %vm195, 0.0
          %197 = vst.msk [vmem:[#allocation4] sm:$0x3] %vm195, -inf
        $region40: #{spatial_attention.1} parent=27 // pred_fallthru
          _
        %v198 = vld [vmem:[%s162] sm:$0xff]
        %v199 = vld [vmem:[#allocation3] sm:$0x3]
        %v201 = vcombine.high %v198, %v198
        %vm203 = vcmask 1043456
        %v204 = vsel %vm203, %v198, 0.0
        %v205 = vrot.slane %v204, 4
        %v206 = vadd.f32 %v204, %v205
        %v207 = vrot.slane %v206, 2
        %v208 = vadd.f32 %v206, %v207
        %v209 = vrot.slane %v208, 1
        %v210 = vadd.f32 %v208, %v209
        %v211 = vsel %vm203, %v201, 0.0
        %v212 = vrot.slane %v211, 4
        %v213 = vadd.f32 %v211, %v212
        %v214 = vrot.slane %v213, 2
        %v215 = vadd.f32 %v213, %v214
        %v216 = vrot.slane %v215, 1
        %v217 = vadd.f32 %v215, %v216
        %v220 = vcombine.low %v210, %v217
        %v222 = vunpack.c.l.s4 1966171168
        %v223 = vunpack.c.0.s8 %v222
        %v224 = vlaneseq
        %v225 = vshrl.u32 %v224, 7
        %v226 = vsub.s32 %v223, %v225
        %v227 = vrot.slane %v220, %v226
        %v229 = vunpack.c.l.s4 1966171168
        %v230 = vunpack.c.0.s8 %v229
        %v231 = vlaneseq
        %v232 = vshrl.u32 %v231, 7
        %v233 = vsub.s32 %v230, %v232
        %v234 = vrot.slane %v227, %v233
        %v236 = vadd.f32 %v199, %v234
        %v237 = vlaneseq
        %vm238 = vcmp.ge.s32.totalorder %v237, 0
        %vm239 = vcmp.lt.s32.totalorder %v237, 256
        %vm240 = vmand %vm238, %vm239
        %241 = vst.msk [vmem:[#allocation3] sm:$0x3] %vm240, %v236
        %v242 = vld [vmem:[#allocation4] sm:$0x3]
        %v243 = vsel %vm203, %v198, -inf
        %v244 = vrot.slane %v243, 4
        %v245 = vmax.f32 %v243, %v244
        %v246 = vrot.slane %v245, 2
        %v247 = vmax.f32 %v245, %v246
        %v248 = vrot.slane %v247, 1
        %v249 = vmax.f32 %v247, %v248
        %v250 = vsel %vm203, %v201, -inf
        %v251 = vrot.slane %v250, 4
        %v252 = vmax.f32 %v250, %v251
        %v253 = vrot.slane %v252, 2
        %v254 = vmax.f32 %v252, %v253
        %v255 = vrot.slane %v254, 1
        %v256 = vmax.f32 %v254, %v255
        %v259 = vcombine.low %v249, %v256
        %v261 = vunpack.c.l.s4 1966171168
        %v262 = vunpack.c.0.s8 %v261
        %v263 = vlaneseq
        %v264 = vshrl.u32 %v263, 7
        %v265 = vsub.s32 %v262, %v264
        %v266 = vrot.slane %v259, %v265
        %v268 = vunpack.c.l.s4 1966171168
        %v269 = vunpack.c.0.s8 %v268
        %v270 = vlaneseq
        %v271 = vshrl.u32 %v270, 7
        %v272 = vsub.s32 %v269, %v271
        %v273 = vrot.slane %v266, %v272
        %v275 = vmax.f32 %v242, %v273
        %276 = vst.msk [vmem:[#allocation4] sm:$0x3] %vm240, %v275
        // Predicated region
        $region41: #{spatial_attention.1} parent=27 // pred_check
          %p277 = pneg %p188
        $region42: #{spatial_attention.1} parent=27 // pred_check_branch
          %279 = sbr.rel (%p277) target = $region44
        $region43: #{spatial_attention.1} parent=27 // pred_region
          %vm280 = vcmp.lt.s32.totalorder %v237, 128
          %vm281 = vmand %vm238, %vm280
          %282 = vst.msk [vmem:[#allocation2] sm:$0x1] %vm281, 0.0
          %283 = vst.msk [vmem:[#allocation2 + $0x4] sm:$0x1] %vm281, 0.0
          %284 = vst.msk [vmem:[#allocation2 + $0x3] sm:$0x1] %vm281, 0.0
          %285 = vst.msk [vmem:[#allocation2 + $0x7] sm:$0x1] %vm281, 0.0
          %v286 = vld [vmem:[#allocation3] sm:$0x3]
          %v287 = vmul.f32 %v286, 0.25
          %288 = vst.msk [vmem:[#allocation2 + $0x1] sm:$0x3] %vm240, %v287
          %v289 = vld [vmem:[#allocation4] sm:$0x3]
          %s290 = scalar_lea.vmem [#allocation2], 4
          %291 = vst.msk [vmem:[%s290 + $0x1] sm:$0x3] %vm240, %v289
          %v292 = vlaneseq
          %v293 = vand.u32 %v292, 127
          %v294 = vadd.s32 %v293, 128
          %vm295 = vcmp.lt.s32.totalorder %v293, 0
          %v296 = vsub.s32 0, %v293
          %v297 = vsel %vm295, %v296, %v293
          %v298 = vshrl.u32 %v297, 4
          %v299 = vand.u32 %v297, 15
          %v300 = vsub.s32 0, %v299
          %v301 = vsel %vm295, %v300, %v299
          %vm302 = vcmp.lt.s32.totalorder %v294, 0
          %v303 = vsub.s32 0, %v294
          %v304 = vsel %vm302, %v303, %v294
          %v305 = vshrl.u32 %v304, 4
          %v306 = vand.u32 %v304, 15
          %v307 = vsub.s32 0, %v306
          %v308 = vsel %vm302, %v307, %v306
          %vm309 = vcmp.ne.s32.totalorder %v301, 0
          %vm310 = vcmp.ne.s32.totalorder %v308, 0
          %vm311 = vcmp.lt.s32.totalorder %v301, 0
          %vm312 = vcmp.lt.s32.totalorder %v308, 0
          %vm313 = vmand %vm311, %vm309
          %vm314 = vmand %vm312, %vm310
          %v315 = vadd.s32 %v301, 16
          %v316 = vadd.s32 %v308, 16
          %v317 = vsel %vm313, %v315, %v301
          %v318 = vsel %vm314, %v316, %v308
          %s319 = sld [smem:[#allocation9]]
          %s320 = sld [smem:[#allocation9 + $0x31]]
          %v321 = vld [vmem:[#allocation2] sm:$0x7]
          %v322 = vstv %s319
          %v323 = vmul.f32 %v321, %v322
          %v324 = vadd.f32 %v323, 0.0
          %v325 = vld [vmem:[%s290] sm:$0x7]
          %v326 = vstv %s320
          %v327 = vmul.f32 %v325, %v326
          %v328 = vadd.f32 %v324, %v327
          %s329 = sld [smem:[#allocation9 + $0x7]]
          %s330 = sld [smem:[#allocation9 + $0x38]]
          %v331 = vstv %s329
          %v332 = vmul.f32 %v321, %v331
          %334 = vrot.lane.b32.xlu0 %v332, 112
          %v335 = vpop.permute.xlu0 %334
          %v336 = vrot.slane %v335, 1
          %vm337 = vcmask 916480
          %v338 = vsel %vm337, %v335, %v336
          %v340 = vadd.f32 %v328, %v338
          %v341 = vstv %s330
          %v342 = vmul.f32 %v325, %v341
          %344 = vrot.lane.b32.xlu0 %v342, 112
          %v345 = vpop.permute.xlu0 %344
          %v346 = vrot.slane %v345, 1
          %v347 = vsel %vm337, %v345, %v346
          %v349 = vadd.f32 %v340, %v347
          %s350 = sld [smem:[#allocation9 + $0xe]]
          %s351 = sld [smem:[#allocation9 + $0x3f]]
          %v352 = vstv %s350
          %v353 = vmul.f32 %v321, %v352
          %355 = vrot.lane.b32.xlu0 %v353, 96
          %v356 = vpop.permute.xlu0 %355
          %v357 = vrot.slane %v356, 1
          %vm358 = vcmask 785408
          %v359 = vsel %vm358, %v356, %v357
          %v361 = vadd.f32 %v349, %v359
          %v362 = vstv %s351
          %v363 = vmul.f32 %v325, %v362
          %365 = vrot.lane.b32.xlu0 %v363, 96
          %v366 = vpop.permute.xlu0 %365
          %v367 = vrot.slane %v366, 1
          %v368 = vsel %vm358, %v366, %v367
          %v370 = vadd.f32 %v361, %v368
          %s371 = sld [smem:[#allocation9 + $0x15]]
          %s372 = sld [smem:[#allocation9 + $0x46]]
          %v373 = vstv %s371
          %v374 = vmul.f32 %v321, %v373
          %376 = vrot.lane.b32.xlu0 %v374, 80
          %v377 = vpop.permute.xlu0 %376
          %v378 = vrot.slane %v377, 1
          %vm379 = vcmask 654336
          %v380 = vsel %vm379, %v377, %v378
          %v382 = vadd.f32 %v370, %v380
          %v383 = vstv %s372
          %v384 = vmul.f32 %v325, %v383
          %386 = vrot.lane.b32.xlu0 %v384, 80
          %v387 = vpop.permute.xlu0 %386
          %v388 = vrot.slane %v387, 1
          %v389 = vsel %vm379, %v387, %v388
          %v391 = vadd.f32 %v382, %v389
          %s392 = sld [smem:[#allocation9 + $0x1c]]
          %s393 = sld [smem:[#allocation9 + $0x4d]]
          %v394 = vld [vmem:[#allocation2 + $0x1] sm:$0x7]
          %v395 = vstv %s392
          %v396 = vmul.f32 %v394, %v395
          %398 = vrot.lane.b32.xlu0 %v396, 64
          %v399 = vpop.permute.xlu0 %398
          %v400 = vrot.slane %v399, 7
          %vm401 = vcmask 523264
          %v402 = vsel %vm401, %v400, %v399
          %v404 = vadd.f32 %v391, %v402
          %v405 = vld [vmem:[%s290 + $0x1] sm:$0x7]
          %v406 = vstv %s393
          %v407 = vmul.f32 %v405, %v406
          %409 = vrot.lane.b32.xlu0 %v407, 64
          %v410 = vpop.permute.xlu0 %409
          %v411 = vrot.slane %v410, 7
          %v412 = vsel %vm401, %v411, %v410
          %v414 = vadd.f32 %v404, %v412
          %s415 = sld [smem:[#allocation9 + $0x23]]
          %s416 = sld [smem:[#allocation9 + $0x54]]
          %v417 = vstv %s415
          %v418 = vmul.f32 %v394, %v417
          %420 = vrot.lane.b32.xlu0 %v418, 48
          %v421 = vpop.permute.xlu0 %420
          %v422 = vrot.slane %v421, 7
          %vm423 = vcmask 392192
          %v424 = vsel %vm423, %v422, %v421
          %v426 = vadd.f32 %v414, %v424
          %v427 = vstv %s416
          %v428 = vmul.f32 %v405, %v427
          %430 = vrot.lane.b32.xlu0 %v428, 48
          %v431 = vpop.permute.xlu0 %430
          %v432 = vrot.slane %v431, 7
          %v433 = vsel %vm423, %v432, %v431
          %v435 = vadd.f32 %v426, %v433
          %s436 = sld [smem:[#allocation9 + $0x2a]]
          %s437 = sld [smem:[#allocation9 + $0x5b]]
          %v438 = vstv %s436
          %v439 = vmul.f32 %v394, %v438
          %441 = vrot.lane.b32.xlu0 %v439, 32
          %v442 = vpop.permute.xlu0 %441
          %v443 = vrot.slane %v442, 7
          %vm444 = vcmask 261120
          %v445 = vsel %vm444, %v443, %v442
          %v447 = vadd.f32 %v435, %v445
          %v448 = vstv %s437
          %v449 = vmul.f32 %v405, %v448
          %451 = vrot.lane.b32.xlu0 %v449, 32
          %v452 = vpop.permute.xlu0 %451
          %v453 = vrot.slane %v452, 7
          %v454 = vsel %vm444, %v453, %v452
          %v456 = vadd.f32 %v447, %v454
          %v457 = vadd.s32 %v317, 4294967293
          %v458 = vadd.s32 %v318, 4294967293
          %vm459 = vcmp.ge.s32.totalorder %v457, 0
          %vm460 = vcmp.ge.s32.totalorder %v458, 0
          %vm461 = vcmp.lt.s32.totalorder %v457, 16
          %vm462 = vcmp.lt.s32.totalorder %v458, 16
          %vm463 = vmand %vm459, %vm461
          %vm464 = vmand %vm460, %vm462
          %v466 = vlaneseq
          %v467 = vshrl.u32 %v466, 7
          %v468 = vsub.s32 0, %v467
          %v469 = vrot.slane %v456, %v468
          %v470 = vlaneseq
          %v471 = vshrl.u32 %v470, 7
          %v472 = vsub.s32 1, %v471
          %v473 = vrot.slane %v456, %v472
          %v474 = vlaneseq
          %v475 = vshrl.u32 %v474, 7
          %v476 = vsub.s32 2, %v475
          %v477 = vrot.slane %v456, %v476
          %478 = vrot.lane.b32.xlu0 %v469, 51
          %v479 = vpop.permute.xlu0 %478
          %480 = vrot.lane.b32.xlu0 %v473, 51
          %v481 = vpop.permute.xlu0 %480
          %482 = vrot.lane.b32.xlu0 %v477, 51
          %v483 = vpop.permute.xlu0 %482
          %vm484 = vcmask 416768
          %v485 = vsel %vm484, %v479, %v481
          %v486 = vsel %vm484, %v481, %v483
          %v489 = vsel %vm463, %v485, 0.0
          %v490 = vsel %vm464, %v486, 0.0
          %v491 = vadd.f32 %v489, 0.0
          %v492 = vadd.f32 %v490, 0.0
          %s493 = sld [smem:[#allocation9 + $0x1]]
          %s494 = sld [smem:[#allocation9 + $0x32]]
          %v495 = vstv %s493
          %v496 = vmul.f32 %v321, %v495
          %v497 = vadd.f32 %v496, 0.0
          %v498 = vstv %s494
          %v499 = vmul.f32 %v325, %v498
          %v500 = vadd.f32 %v497, %v499
          %s501 = sld [smem:[#allocation9 + $0x8]]
          %s502 = sld [smem:[#allocation9 + $0x39]]
          %v503 = vstv %s501
          %v504 = vmul.f32 %v321, %v503
          %506 = vrot.lane.b32.xlu0 %v504, 112
          %v507 = vpop.permute.xlu0 %506
          %v508 = vrot.slane %v507, 1
          %v509 = vsel %vm337, %v507, %v508
          %v511 = vadd.f32 %v500, %v509
          %v512 = vstv %s502
          %v513 = vmul.f32 %v325, %v512
          %515 = vrot.lane.b32.xlu0 %v513, 112
          %v516 = vpop.permute.xlu0 %515
          %v517 = vrot.slane %v516, 1
          %v518 = vsel %vm337, %v516, %v517
          %v520 = vadd.f32 %v511, %v518
          %s521 = sld [smem:[#allocation9 + $0xf]]
          %s522 = sld [smem:[#allocation9 + $0x40]]
          %v523 = vstv %s521
          %v524 = vmul.f32 %v321, %v523
          %526 = vrot.lane.b32.xlu0 %v524, 96
          %v527 = vpop.permute.xlu0 %526
          %v528 = vrot.slane %v527, 1
          %v529 = vsel %vm358, %v527, %v528
          %v531 = vadd.f32 %v520, %v529
          %v532 = vstv %s522
          %v533 = vmul.f32 %v325, %v532
          %535 = vrot.lane.b32.xlu0 %v533, 96
          %v536 = vpop.permute.xlu0 %535
          %v537 = vrot.slane %v536, 1
          %v538 = vsel %vm358, %v536, %v537
          %v540 = vadd.f32 %v531, %v538
          %s541 = sld [smem:[#allocation9 + $0x16]]
          %s542 = sld [smem:[#allocation9 + $0x47]]
          %v543 = vstv %s541
          %v544 = vmul.f32 %v321, %v543
          %546 = vrot.lane.b32.xlu0 %v544, 80
          %v547 = vpop.permute.xlu0 %546
          %v548 = vrot.slane %v547, 1
          %v549 = vsel %vm379, %v547, %v548
          %v551 = vadd.f32 %v540, %v549
          %v552 = vstv %s542
          %v553 = vmul.f32 %v325, %v552
          %555 = vrot.lane.b32.xlu0 %v553, 80
          %v556 = vpop.permute.xlu0 %555
          %v557 = vrot.slane %v556, 1
          %v558 = vsel %vm379, %v556, %v557
          %v560 = vadd.f32 %v551, %v558
          %s561 = sld [smem:[#allocation9 + $0x1d]]
          %s562 = sld [smem:[#allocation9 + $0x4e]]
          %v563 = vstv %s561
          %v564 = vmul.f32 %v394, %v563
          %566 = vrot.lane.b32.xlu0 %v564, 64
          %v567 = vpop.permute.xlu0 %566
          %v568 = vrot.slane %v567, 7
          %v569 = vsel %vm401, %v568, %v567
          %v571 = vadd.f32 %v560, %v569
          %v572 = vstv %s562
          %v573 = vmul.f32 %v405, %v572
          %575 = vrot.lane.b32.xlu0 %v573, 64
          %v576 = vpop.permute.xlu0 %575
          %v577 = vrot.slane %v576, 7
          %v578 = vsel %vm401, %v577, %v576
          %v580 = vadd.f32 %v571, %v578
          %s581 = sld [smem:[#allocation9 + $0x24]]
          %s582 = sld [smem:[#allocation9 + $0x55]]
          %v583 = vstv %s581
          %v584 = vmul.f32 %v394, %v583
          %586 = vrot.lane.b32.xlu0 %v584, 48
          %v587 = vpop.permute.xlu0 %586
          %v588 = vrot.slane %v587, 7
          %v589 = vsel %vm423, %v588, %v587
          %v591 = vadd.f32 %v580, %v589
          %v592 = vstv %s582
          %v593 = vmul.f32 %v405, %v592
          %595 = vrot.lane.b32.xlu0 %v593, 48
          %v596 = vpop.permute.xlu0 %595
          %v597 = vrot.slane %v596, 7
          %v598 = vsel %vm423, %v597, %v596
          %v600 = vadd.f32 %v591, %v598
          %s601 = sld [smem:[#allocation9 + $0x2b]]
          %s602 = sld [smem:[#allocation9 + $0x5c]]
          %v603 = vstv %s601
          %v604 = vmul.f32 %v394, %v603
          %606 = vrot.lane.b32.xlu0 %v604, 32
          %v607 = vpop.permute.xlu0 %606
          %v608 = vrot.slane %v607, 7
          %v609 = vsel %vm444, %v608, %v607
          %v611 = vadd.f32 %v600, %v609
          %v612 = vstv %s602
          %v613 = vmul.f32 %v405, %v612
          %615 = vrot.lane.b32.xlu0 %v613, 32
          %v616 = vpop.permute.xlu0 %615
          %v617 = vrot.slane %v616, 7
          %v618 = vsel %vm444, %v617, %v616
          %v620 = vadd.f32 %v611, %v618
          %v621 = vadd.s32 %v317, 4294967294
          %v622 = vadd.s32 %v318, 4294967294
          %vm623 = vcmp.ge.s32.totalorder %v621, 0
          %vm624 = vcmp.ge.s32.totalorder %v622, 0
          %vm625 = vcmp.lt.s32.totalorder %v621, 16
          %vm626 = vcmp.lt.s32.totalorder %v622, 16
          %vm627 = vmand %vm623, %vm625
          %vm628 = vmand %vm624, %vm626
          %v630 = vlaneseq
          %v631 = vshrl.u32 %v630, 7
          %v632 = vsub.s32 0, %v631
          %v633 = vrot.slane %v620, %v632
          %v634 = vlaneseq
          %v635 = vshrl.u32 %v634, 7
          %v636 = vsub.s32 1, %v635
          %v637 = vrot.slane %v620, %v636
          %v638 = vlaneseq
          %v639 = vshrl.u32 %v638, 7
          %v640 = vsub.s32 2, %v639
          %v641 = vrot.slane %v620, %v640
          %642 = vrot.lane.b32.xlu0 %v633, 50
          %v643 = vpop.permute.xlu0 %642
          %644 = vrot.lane.b32.xlu0 %v637, 50
          %v645 = vpop.permute.xlu0 %644
          %646 = vrot.lane.b32.xlu0 %v641, 50
          %v647 = vpop.permute.xlu0 %646
          %vm648 = vcmask 408576
          %v649 = vsel %vm648, %v643, %v645
          %v650 = vsel %vm648, %v645, %v647
          %v653 = vsel %vm627, %v649, 0.0
          %v654 = vsel %vm628, %v650, 0.0
          %v655 = vadd.f32 %v491, %v653
          %v656 = vadd.f32 %v492, %v654
          %s657 = sld [smem:[#allocation9 + $0x2]]
          %s658 = sld [smem:[#allocation9 + $0x33]]
          %v659 = vstv %s657
          %v660 = vmul.f32 %v321, %v659
          %v661 = vadd.f32 %v660, 0.0
          %v662 = vstv %s658
          %v663 = vmul.f32 %v325, %v662
          %v664 = vadd.f32 %v661, %v663
          %s665 = sld [smem:[#allocation9 + $0x9]]
          %s666 = sld [smem:[#allocation9 + $0x3a]]
          %v667 = vstv %s665
          %v668 = vmul.f32 %v321, %v667
          %670 = vrot.lane.b32.xlu0 %v668, 112
          %v671 = vpop.permute.xlu0 %670
          %v672 = vrot.slane %v671, 1
          %v673 = vsel %vm337, %v671, %v672
          %v675 = vadd.f32 %v664, %v673
          %v676 = vstv %s666
          %v677 = vmul.f32 %v325, %v676
          %679 = vrot.lane.b32.xlu0 %v677, 112
          %v680 = vpop.permute.xlu0 %679
          %v681 = vrot.slane %v680, 1
          %v682 = vsel %vm337, %v680, %v681
          %v684 = vadd.f32 %v675, %v682
          %s685 = sld [smem:[#allocation9 + $0x10]]
          %s686 = sld [smem:[#allocation9 + $0x41]]
          %v687 = vstv %s685
          %v688 = vmul.f32 %v321, %v687
          %690 = vrot.lane.b32.xlu0 %v688, 96
          %v691 = vpop.permute.xlu0 %690
          %v692 = vrot.slane %v691, 1
          %v693 = vsel %vm358, %v691, %v692
          %v695 = vadd.f32 %v684, %v693
          %v696 = vstv %s686
          %v697 = vmul.f32 %v325, %v696
          %699 = vrot.lane.b32.xlu0 %v697, 96
          %v700 = vpop.permute.xlu0 %699
          %v701 = vrot.slane %v700, 1
          %v702 = vsel %vm358, %v700, %v701
          %v704 = vadd.f32 %v695, %v702
          %s705 = sld [smem:[#allocation9 + $0x17]]
          %s706 = sld [smem:[#allocation9 + $0x48]]
          %v707 = vstv %s705
          %v708 = vmul.f32 %v321, %v707
          %710 = vrot.lane.b32.xlu0 %v708, 80
          %v711 = vpop.permute.xlu0 %710
          %v712 = vrot.slane %v711, 1
          %v713 = vsel %vm379, %v711, %v712
          %v715 = vadd.f32 %v704, %v713
          %v716 = vstv %s706
          %v717 = vmul.f32 %v325, %v716
          %719 = vrot.lane.b32.xlu0 %v717, 80
          %v720 = vpop.permute.xlu0 %719
          %v721 = vrot.slane %v720, 1
          %v722 = vsel %vm379, %v720, %v721
          %v724 = vadd.f32 %v715, %v722
          %s725 = sld [smem:[#allocation9 + $0x1e]]
          %s726 = sld [smem:[#allocation9 + $0x4f]]
          %v727 = vstv %s725
          %v728 = vmul.f32 %v394, %v727
          %730 = vrot.lane.b32.xlu0 %v728, 64
          %v731 = vpop.permute.xlu0 %730
          %v732 = vrot.slane %v731, 7
          %v733 = vsel %vm401, %v732, %v731
          %v735 = vadd.f32 %v724, %v733
          %v736 = vstv %s726
          %v737 = vmul.f32 %v405, %v736
          %739 = vrot.lane.b32.xlu0 %v737, 64
          %v740 = vpop.permute.xlu0 %739
          %v741 = vrot.slane %v740, 7
          %v742 = vsel %vm401, %v741, %v740
          %v744 = vadd.f32 %v735, %v742
          %s745 = sld [smem:[#allocation9 + $0x25]]
          %s746 = sld [smem:[#allocation9 + $0x56]]
          %v747 = vstv %s745
          %v748 = vmul.f32 %v394, %v747
          %750 = vrot.lane.b32.xlu0 %v748, 48
          %v751 = vpop.permute.xlu0 %750
          %v752 = vrot.slane %v751, 7
          %v753 = vsel %vm423, %v752, %v751
          %v755 = vadd.f32 %v744, %v753
          %v756 = vstv %s746
          %v757 = vmul.f32 %v405, %v756
          %759 = vrot.lane.b32.xlu0 %v757, 48
          %v760 = vpop.permute.xlu0 %759
          %v761 = vrot.slane %v760, 7
          %v762 = vsel %vm423, %v761, %v760
          %v764 = vadd.f32 %v755, %v762
          %s765 = sld [smem:[#allocation9 + $0x2c]]
          %s766 = sld [smem:[#allocation9 + $0x5d]]
          %v767 = vstv %s765
          %v768 = vmul.f32 %v394, %v767
          %770 = vrot.lane.b32.xlu0 %v768, 32
          %v771 = vpop.permute.xlu0 %770
          %v772 = vrot.slane %v771, 7
          %v773 = vsel %vm444, %v772, %v771
          %v775 = vadd.f32 %v764, %v773
          %v776 = vstv %s766
          %v777 = vmul.f32 %v405, %v776
          %779 = vrot.lane.b32.xlu0 %v777, 32
          %v780 = vpop.permute.xlu0 %779
          %v781 = vrot.slane %v780, 7
          %v782 = vsel %vm444, %v781, %v780
          %v784 = vadd.f32 %v775, %v782
          %v785 = vadd.s32 %v317, 4294967295
          %v786 = vadd.s32 %v318, 4294967295
          %vm787 = vcmp.ge.s32.totalorder %v785, 0
          %vm788 = vcmp.ge.s32.totalorder %v786, 0
          %vm789 = vcmp.lt.s32.totalorder %v785, 16
          %vm790 = vcmp.lt.s32.totalorder %v786, 16
          %vm791 = vmand %vm787, %vm789
          %vm792 = vmand %vm788, %vm790
          %v794 = vlaneseq
          %v795 = vshrl.u32 %v794, 7
          %v796 = vsub.s32 0, %v795
          %v797 = vrot.slane %v784, %v796
          %v798 = vlaneseq
          %v799 = vshrl.u32 %v798, 7
          %v800 = vsub.s32 1, %v799
          %v801 = vrot.slane %v784, %v800
          %v802 = vlaneseq
          %v803 = vshrl.u32 %v802, 7
          %v804 = vsub.s32 2, %v803
          %v805 = vrot.slane %v784, %v804
          %806 = vrot.lane.b32.xlu0 %v797, 49
          %v807 = vpop.permute.xlu0 %806
          %808 = vrot.lane.b32.xlu0 %v801, 49
          %v809 = vpop.permute.xlu0 %808
          %810 = vrot.lane.b32.xlu0 %v805, 49
          %v811 = vpop.permute.xlu0 %810
          %vm812 = vcmask 400384
          %v813 = vsel %vm812, %v807, %v809
          %v814 = vsel %vm812, %v809, %v811
          %v817 = vsel %vm791, %v813, 0.0
          %v818 = vsel %vm792, %v814, 0.0
          %v819 = vadd.f32 %v655, %v817
          %v820 = vadd.f32 %v656, %v818
          %s821 = sld [smem:[#allocation9 + $0x3]]
          %s822 = sld [smem:[#allocation9 + $0x34]]
          %v823 = vstv %s821
          %v824 = vmul.f32 %v321, %v823
          %v825 = vadd.f32 %v824, 0.0
          %v826 = vstv %s822
          %v827 = vmul.f32 %v325, %v826
          %v828 = vadd.f32 %v825, %v827
          %s829 = sld [smem:[#allocation9 + $0xa]]
          %s830 = sld [smem:[#allocation9 + $0x3b]]
          %v831 = vstv %s829
          %v832 = vmul.f32 %v321, %v831
          %834 = vrot.lane.b32.xlu0 %v832, 112
          %v835 = vpop.permute.xlu0 %834
          %v836 = vrot.slane %v835, 1
          %v837 = vsel %vm337, %v835, %v836
          %v839 = vadd.f32 %v828, %v837
          %v840 = vstv %s830
          %v841 = vmul.f32 %v325, %v840
          %843 = vrot.lane.b32.xlu0 %v841, 112
          %v844 = vpop.permute.xlu0 %843
          %v845 = vrot.slane %v844, 1
          %v846 = vsel %vm337, %v844, %v845
          %v848 = vadd.f32 %v839, %v846
          %s849 = sld [smem:[#allocation9 + $0x11]]
          %s850 = sld [smem:[#allocation9 + $0x42]]
          %v851 = vstv %s849
          %v852 = vmul.f32 %v321, %v851
          %854 = vrot.lane.b32.xlu0 %v852, 96
          %v855 = vpop.permute.xlu0 %854
          %v856 = vrot.slane %v855, 1
          %v857 = vsel %vm358, %v855, %v856
          %v859 = vadd.f32 %v848, %v857
          %v860 = vstv %s850
          %v861 = vmul.f32 %v325, %v860
          %863 = vrot.lane.b32.xlu0 %v861, 96
          %v864 = vpop.permute.xlu0 %863
          %v865 = vrot.slane %v864, 1
          %v866 = vsel %vm358, %v864, %v865
          %v868 = vadd.f32 %v859, %v866
          %s869 = sld [smem:[#allocation9 + $0x18]]
          %s870 = sld [smem:[#allocation9 + $0x49]]
          %v871 = vld [vmem:[#allocation2 + $0x1] sm:$0x3]
          %v872 = vstv %s869
          %v873 = vmul.f32 %v871, %v872
          %875 = vrot.lane.b32.xlu0 %v873, 80
          %v876 = vpop.permute.xlu0 %875
          %v877 = vrot.slane %v876, 7
          %v878 = vsel %vm379, %v877, %v876
          %v880 = vadd.f32 %v868, %v878
          %v881 = vld [vmem:[%s290 + $0x1] sm:$0x3]
          %v882 = vstv %s870
          %v883 = vmul.f32 %v881, %v882
          %885 = vrot.lane.b32.xlu0 %v883, 80
          %v886 = vpop.permute.xlu0 %885
          %v887 = vrot.slane %v886, 7
          %v888 = vsel %vm379, %v887, %v886
          %v890 = vadd.f32 %v880, %v888
          %s891 = sld [smem:[#allocation9 + $0x1f]]
          %s892 = sld [smem:[#allocation9 + $0x50]]
          %v893 = vstv %s891
          %v894 = vmul.f32 %v394, %v893
          %896 = vrot.lane.b32.xlu0 %v894, 64
          %v897 = vpop.permute.xlu0 %896
          %v898 = vrot.slane %v897, 7
          %v899 = vsel %vm401, %v898, %v897
          %v901 = vadd.f32 %v890, %v899
          %v902 = vstv %s892
          %v903 = vmul.f32 %v405, %v902
          %905 = vrot.lane.b32.xlu0 %v903, 64
          %v906 = vpop.permute.xlu0 %905
          %v907 = vrot.slane %v906, 7
          %v908 = vsel %vm401, %v907, %v906
          %v910 = vadd.f32 %v901, %v908
          %s911 = sld [smem:[#allocation9 + $0x26]]
          %s912 = sld [smem:[#allocation9 + $0x57]]
          %v913 = vstv %s911
          %v914 = vmul.f32 %v394, %v913
          %916 = vrot.lane.b32.xlu0 %v914, 48
          %v917 = vpop.permute.xlu0 %916
          %v918 = vrot.slane %v917, 7
          %v919 = vsel %vm423, %v918, %v917
          %v921 = vadd.f32 %v910, %v919
          %v922 = vstv %s912
          %v923 = vmul.f32 %v405, %v922
          %925 = vrot.lane.b32.xlu0 %v923, 48
          %v926 = vpop.permute.xlu0 %925
          %v927 = vrot.slane %v926, 7
          %v928 = vsel %vm423, %v927, %v926
          %v930 = vadd.f32 %v921, %v928
          %s931 = sld [smem:[#allocation9 + $0x2d]]
          %s932 = sld [smem:[#allocation9 + $0x5e]]
          %v933 = vstv %s931
          %v934 = vmul.f32 %v394, %v933
          %936 = vrot.lane.b32.xlu0 %v934, 32
          %v937 = vpop.permute.xlu0 %936
          %v938 = vrot.slane %v937, 7
          %v939 = vsel %vm444, %v938, %v937
          %v941 = vadd.f32 %v930, %v939
          %v942 = vstv %s932
          %v943 = vmul.f32 %v405, %v942
          %945 = vrot.lane.b32.xlu0 %v943, 32
          %v946 = vpop.permute.xlu0 %945
          %v947 = vrot.slane %v946, 7
          %v948 = vsel %vm444, %v947, %v946
          %v950 = vadd.f32 %v941, %v948
          %v952 = vlaneseq
          %v953 = vshrl.u32 %v952, 7
          %v954 = vsub.s32 0, %v953
          %v955 = vrot.slane %v950, %v954
          %v956 = vlaneseq
          %v957 = vshrl.u32 %v956, 7
          %v958 = vsub.s32 1, %v957
          %v959 = vrot.slane %v950, %v958
          %v960 = vlaneseq
          %v961 = vshrl.u32 %v960, 7
          %v962 = vsub.s32 2, %v961
          %v963 = vrot.slane %v950, %v962
          %964 = vrot.lane.b32.xlu0 %v955, 48
          %v965 = vpop.permute.xlu0 %964
          %966 = vrot.lane.b32.xlu0 %v959, 48
          %v967 = vpop.permute.xlu0 %966
          %968 = vrot.lane.b32.xlu0 %v963, 48
          %v969 = vpop.permute.xlu0 %968
          %v970 = vsel %vm423, %v965, %v967
          %v971 = vsel %vm423, %v967, %v969
          %v974 = vadd.f32 %v819, %v970
          %v975 = vadd.f32 %v820, %v971
          %s976 = sld [smem:[#allocation9 + $0x4]]
          %s977 = sld [smem:[#allocation9 + $0x35]]
          %v978 = vstv %s976
          %v979 = vmul.f32 %v321, %v978
          %v980 = vadd.f32 %v979, 0.0
          %v981 = vstv %s977
          %v982 = vmul.f32 %v325, %v981
          %v983 = vadd.f32 %v980, %v982
          %s984 = sld [smem:[#allocation9 + $0xb]]
          %s985 = sld [smem:[#allocation9 + $0x3c]]
          %v986 = vstv %s984
          %v987 = vmul.f32 %v321, %v986
          %989 = vrot.lane.b32.xlu0 %v987, 112
          %v990 = vpop.permute.xlu0 %989
          %v991 = vrot.slane %v990, 1
          %v992 = vsel %vm337, %v990, %v991
          %v994 = vadd.f32 %v983, %v992
          %v995 = vstv %s985
          %v996 = vmul.f32 %v325, %v995
          %998 = vrot.lane.b32.xlu0 %v996, 112
          %v999 = vpop.permute.xlu0 %998
          %v1000 = vrot.slane %v999, 1
          %v1001 = vsel %vm337, %v999, %v1000
          %v1003 = vadd.f32 %v994, %v1001
          %s1004 = sld [smem:[#allocation9 + $0x12]]
          %s1005 = sld [smem:[#allocation9 + $0x43]]
          %v1006 = vstv %s1004
          %v1007 = vmul.f32 %v321, %v1006
          %1009 = vrot.lane.b32.xlu0 %v1007, 96
          %v1010 = vpop.permute.xlu0 %1009
          %v1011 = vrot.slane %v1010, 1
          %v1012 = vsel %vm358, %v1010, %v1011
          %v1014 = vadd.f32 %v1003, %v1012
          %v1015 = vstv %s1005
          %v1016 = vmul.f32 %v325, %v1015
          %1018 = vrot.lane.b32.xlu0 %v1016, 96
          %v1019 = vpop.permute.xlu0 %1018
          %v1020 = vrot.slane %v1019, 1
          %v1021 = vsel %vm358, %v1019, %v1020
          %v1023 = vadd.f32 %v1014, %v1021
          %s1024 = sld [smem:[#allocation9 + $0x19]]
          %s1025 = sld [smem:[#allocation9 + $0x4a]]
          %v1026 = vstv %s1024
          %v1027 = vmul.f32 %v394, %v1026
          %1029 = vrot.lane.b32.xlu0 %v1027, 80
          %v1030 = vpop.permute.xlu0 %1029
          %v1031 = vrot.slane %v1030, 7
          %v1032 = vsel %vm379, %v1031, %v1030
          %v1034 = vadd.f32 %v1023, %v1032
          %v1035 = vstv %s1025
          %v1036 = vmul.f32 %v405, %v1035
          %1038 = vrot.lane.b32.xlu0 %v1036, 80
          %v1039 = vpop.permute.xlu0 %1038
          %v1040 = vrot.slane %v1039, 7
          %v1041 = vsel %vm379, %v1040, %v1039
          %v1043 = vadd.f32 %v1034, %v1041
          %s1044 = sld [smem:[#allocation9 + $0x20]]
          %s1045 = sld [smem:[#allocation9 + $0x51]]
          %v1046 = vstv %s1044
          %v1047 = vmul.f32 %v394, %v1046
          %1049 = vrot.lane.b32.xlu0 %v1047, 64
          %v1050 = vpop.permute.xlu0 %1049
          %v1051 = vrot.slane %v1050, 7
          %v1052 = vsel %vm401, %v1051, %v1050
          %v1054 = vadd.f32 %v1043, %v1052
          %v1055 = vstv %s1045
          %v1056 = vmul.f32 %v405, %v1055
          %1058 = vrot.lane.b32.xlu0 %v1056, 64
          %v1059 = vpop.permute.xlu0 %1058
          %v1060 = vrot.slane %v1059, 7
          %v1061 = vsel %vm401, %v1060, %v1059
          %v1063 = vadd.f32 %v1054, %v1061
          %s1064 = sld [smem:[#allocation9 + $0x27]]
          %s1065 = sld [smem:[#allocation9 + $0x58]]
          %v1066 = vstv %s1064
          %v1067 = vmul.f32 %v394, %v1066
          %1069 = vrot.lane.b32.xlu0 %v1067, 48
          %v1070 = vpop.permute.xlu0 %1069
          %v1071 = vrot.slane %v1070, 7
          %v1072 = vsel %vm423, %v1071, %v1070
          %v1074 = vadd.f32 %v1063, %v1072
          %v1075 = vstv %s1065
          %v1076 = vmul.f32 %v405, %v1075
          %1078 = vrot.lane.b32.xlu0 %v1076, 48
          %v1079 = vpop.permute.xlu0 %1078
          %v1080 = vrot.slane %v1079, 7
          %v1081 = vsel %vm423, %v1080, %v1079
          %v1083 = vadd.f32 %v1074, %v1081
          %s1084 = sld [smem:[#allocation9 + $0x2e]]
          %s1085 = sld [smem:[#allocation9 + $0x5f]]
          %v1086 = vstv %s1084
          %v1087 = vmul.f32 %v394, %v1086
          %1089 = vrot.lane.b32.xlu0 %v1087, 32
          %v1090 = vpop.permute.xlu0 %1089
          %v1091 = vrot.slane %v1090, 7
          %v1092 = vsel %vm444, %v1091, %v1090
          %v1094 = vadd.f32 %v1083, %v1092
          %v1095 = vstv %s1085
          %v1096 = vmul.f32 %v405, %v1095
          %1098 = vrot.lane.b32.xlu0 %v1096, 32
          %v1099 = vpop.permute.xlu0 %1098
          %v1100 = vrot.slane %v1099, 7
          %v1101 = vsel %vm444, %v1100, %v1099
          %v1103 = vadd.f32 %v1094, %v1101
          %v1104 = vadd.s32 %v317, 1
          %v1105 = vadd.s32 %v318, 1
          %vm1106 = vcmp.ge.s32.totalorder %v1104, 0
          %vm1107 = vcmp.ge.s32.totalorder %v1105, 0
          %vm1108 = vcmp.lt.s32.totalorder %v1104, 16
          %vm1109 = vcmp.lt.s32.totalorder %v1105, 16
          %vm1110 = vmand %vm1106, %vm1108
          %vm1111 = vmand %vm1107, %vm1109
          %v1113 = vlaneseq
          %v1114 = vshrl.u32 %v1113, 7
          %v1115 = vsub.s32 0, %v1114
          %v1116 = vrot.slane %v1103, %v1115
          %v1117 = vlaneseq
          %v1118 = vshrl.u32 %v1117, 7
          %v1119 = vsub.s32 1, %v1118
          %v1120 = vrot.slane %v1103, %v1119
          %v1121 = vlaneseq
          %v1122 = vshrl.u32 %v1121, 7
          %v1123 = vsub.s32 2, %v1122
          %v1124 = vrot.slane %v1103, %v1123
          %1125 = vrot.lane.b32.xlu0 %v1116, 47
          %v1126 = vpop.permute.xlu0 %1125
          %1127 = vrot.lane.b32.xlu0 %v1120, 47
          %v1128 = vpop.permute.xlu0 %1127
          %1129 = vrot.lane.b32.xlu0 %v1124, 47
          %v1130 = vpop.permute.xlu0 %1129
          %vm1131 = vcmask 384000
          %v1132 = vsel %vm1131, %v1126, %v1128
          %v1133 = vsel %vm1131, %v1128, %v1130
          %v1136 = vsel %vm1110, %v1132, 0.0
          %v1137 = vsel %vm1111, %v1133, 0.0
          %v1138 = vadd.f32 %v974, %v1136
          %v1139 = vadd.f32 %v975, %v1137
          %s1140 = sld [smem:[#allocation9 + $0x5]]
          %s1141 = sld [smem:[#allocation9 + $0x36]]
          %v1142 = vstv %s1140
          %v1143 = vmul.f32 %v321, %v1142
          %v1144 = vadd.f32 %v1143, 0.0
          %v1145 = vstv %s1141
          %v1146 = vmul.f32 %v325, %v1145
          %v1147 = vadd.f32 %v1144, %v1146
          %s1148 = sld [smem:[#allocation9 + $0xc]]
          %s1149 = sld [smem:[#allocation9 + $0x3d]]
          %v1150 = vstv %s1148
          %v1151 = vmul.f32 %v321, %v1150
          %1153 = vrot.lane.b32.xlu0 %v1151, 112
          %v1154 = vpop.permute.xlu0 %1153
          %v1155 = vrot.slane %v1154, 1
          %v1156 = vsel %vm337, %v1154, %v1155
          %v1158 = vadd.f32 %v1147, %v1156
          %v1159 = vstv %s1149
          %v1160 = vmul.f32 %v325, %v1159
          %1162 = vrot.lane.b32.xlu0 %v1160, 112
          %v1163 = vpop.permute.xlu0 %1162
          %v1164 = vrot.slane %v1163, 1
          %v1165 = vsel %vm337, %v1163, %v1164
          %v1167 = vadd.f32 %v1158, %v1165
          %s1168 = sld [smem:[#allocation9 + $0x13]]
          %s1169 = sld [smem:[#allocation9 + $0x44]]
          %v1170 = vstv %s1168
          %v1171 = vmul.f32 %v321, %v1170
          %1173 = vrot.lane.b32.xlu0 %v1171, 96
          %v1174 = vpop.permute.xlu0 %1173
          %v1175 = vrot.slane %v1174, 1
          %v1176 = vsel %vm358, %v1174, %v1175
          %v1178 = vadd.f32 %v1167, %v1176
          %v1179 = vstv %s1169
          %v1180 = vmul.f32 %v325, %v1179
          %1182 = vrot.lane.b32.xlu0 %v1180, 96
          %v1183 = vpop.permute.xlu0 %1182
          %v1184 = vrot.slane %v1183, 1
          %v1185 = vsel %vm358, %v1183, %v1184
          %v1187 = vadd.f32 %v1178, %v1185
          %s1188 = sld [smem:[#allocation9 + $0x1a]]
          %s1189 = sld [smem:[#allocation9 + $0x4b]]
          %v1190 = vstv %s1188
          %v1191 = vmul.f32 %v394, %v1190
          %1193 = vrot.lane.b32.xlu0 %v1191, 80
          %v1194 = vpop.permute.xlu0 %1193
          %v1195 = vrot.slane %v1194, 7
          %v1196 = vsel %vm379, %v1195, %v1194
          %v1198 = vadd.f32 %v1187, %v1196
          %v1199 = vstv %s1189
          %v1200 = vmul.f32 %v405, %v1199
          %1202 = vrot.lane.b32.xlu0 %v1200, 80
          %v1203 = vpop.permute.xlu0 %1202
          %v1204 = vrot.slane %v1203, 7
          %v1205 = vsel %vm379, %v1204, %v1203
          %v1207 = vadd.f32 %v1198, %v1205
          %s1208 = sld [smem:[#allocation9 + $0x21]]
          %s1209 = sld [smem:[#allocation9 + $0x52]]
          %v1210 = vstv %s1208
          %v1211 = vmul.f32 %v394, %v1210
          %1213 = vrot.lane.b32.xlu0 %v1211, 64
          %v1214 = vpop.permute.xlu0 %1213
          %v1215 = vrot.slane %v1214, 7
          %v1216 = vsel %vm401, %v1215, %v1214
          %v1218 = vadd.f32 %v1207, %v1216
          %v1219 = vstv %s1209
          %v1220 = vmul.f32 %v405, %v1219
          %1222 = vrot.lane.b32.xlu0 %v1220, 64
          %v1223 = vpop.permute.xlu0 %1222
          %v1224 = vrot.slane %v1223, 7
          %v1225 = vsel %vm401, %v1224, %v1223
          %v1227 = vadd.f32 %v1218, %v1225
          %s1228 = sld [smem:[#allocation9 + $0x28]]
          %s1229 = sld [smem:[#allocation9 + $0x59]]
          %v1230 = vstv %s1228
          %v1231 = vmul.f32 %v394, %v1230
          %1233 = vrot.lane.b32.xlu0 %v1231, 48
          %v1234 = vpop.permute.xlu0 %1233
          %v1235 = vrot.slane %v1234, 7
          %v1236 = vsel %vm423, %v1235, %v1234
          %v1238 = vadd.f32 %v1227, %v1236
          %v1239 = vstv %s1229
          %v1240 = vmul.f32 %v405, %v1239
          %1242 = vrot.lane.b32.xlu0 %v1240, 48
          %v1243 = vpop.permute.xlu0 %1242
          %v1244 = vrot.slane %v1243, 7
          %v1245 = vsel %vm423, %v1244, %v1243
          %v1247 = vadd.f32 %v1238, %v1245
          %s1248 = sld [smem:[#allocation9 + $0x2f]]
          %s1249 = sld [smem:[#allocation9 + $0x60]]
          %v1250 = vstv %s1248
          %v1251 = vmul.f32 %v394, %v1250
          %1253 = vrot.lane.b32.xlu0 %v1251, 32
          %v1254 = vpop.permute.xlu0 %1253
          %v1255 = vrot.slane %v1254, 7
          %v1256 = vsel %vm444, %v1255, %v1254
          %v1258 = vadd.f32 %v1247, %v1256
          %v1259 = vstv %s1249
          %v1260 = vmul.f32 %v405, %v1259
          %1262 = vrot.lane.b32.xlu0 %v1260, 32
          %v1263 = vpop.permute.xlu0 %1262
          %v1264 = vrot.slane %v1263, 7
          %v1265 = vsel %vm444, %v1264, %v1263
          %v1267 = vadd.f32 %v1258, %v1265
          %v1268 = vadd.s32 %v317, 2
          %v1269 = vadd.s32 %v318, 2
          %vm1270 = vcmp.ge.s32.totalorder %v1268, 0
          %vm1271 = vcmp.ge.s32.totalorder %v1269, 0
          %vm1272 = vcmp.lt.s32.totalorder %v1268, 16
          %vm1273 = vcmp.lt.s32.totalorder %v1269, 16
          %vm1274 = vmand %vm1270, %vm1272
          %vm1275 = vmand %vm1271, %vm1273
          %v1277 = vlaneseq
          %v1278 = vshrl.u32 %v1277, 7
          %v1279 = vsub.s32 0, %v1278
          %v1280 = vrot.slane %v1267, %v1279
          %v1281 = vlaneseq
          %v1282 = vshrl.u32 %v1281, 7
          %v1283 = vsub.s32 1, %v1282
          %v1284 = vrot.slane %v1267, %v1283
          %v1285 = vlaneseq
          %v1286 = vshrl.u32 %v1285, 7
          %v1287 = vsub.s32 2, %v1286
          %v1288 = vrot.slane %v1267, %v1287
          %1289 = vrot.lane.b32.xlu0 %v1280, 46
          %v1290 = vpop.permute.xlu0 %1289
          %1291 = vrot.lane.b32.xlu0 %v1284, 46
          %v1292 = vpop.permute.xlu0 %1291
          %1293 = vrot.lane.b32.xlu0 %v1288, 46
          %v1294 = vpop.permute.xlu0 %1293
          %vm1295 = vcmask 375808
          %v1296 = vsel %vm1295, %v1290, %v1292
          %v1297 = vsel %vm1295, %v1292, %v1294
          %v1300 = vsel %vm1274, %v1296, 0.0
          %v1301 = vsel %vm1275, %v1297, 0.0
          %v1302 = vadd.f32 %v1138, %v1300
          %v1303 = vadd.f32 %v1139, %v1301
          %s1304 = sld [smem:[#allocation9 + $0x6]]
          %s1305 = sld [smem:[#allocation9 + $0x37]]
          %v1306 = vstv %s1304
          %v1307 = vmul.f32 %v321, %v1306
          %v1308 = vadd.f32 %v1307, 0.0
          %v1309 = vstv %s1305
          %v1310 = vmul.f32 %v325, %v1309
          %v1311 = vadd.f32 %v1308, %v1310
          %s1312 = sld [smem:[#allocation9 + $0xd]]
          %s1313 = sld [smem:[#allocation9 + $0x3e]]
          %v1314 = vstv %s1312
          %v1315 = vmul.f32 %v321, %v1314
          %1317 = vrot.lane.b32.xlu0 %v1315, 112
          %v1318 = vpop.permute.xlu0 %1317
          %v1319 = vrot.slane %v1318, 1
          %v1320 = vsel %vm337, %v1318, %v1319
          %v1322 = vadd.f32 %v1311, %v1320
          %v1323 = vstv %s1313
          %v1324 = vmul.f32 %v325, %v1323
          %1326 = vrot.lane.b32.xlu0 %v1324, 112
          %v1327 = vpop.permute.xlu0 %1326
          %v1328 = vrot.slane %v1327, 1
          %v1329 = vsel %vm337, %v1327, %v1328
          %v1331 = vadd.f32 %v1322, %v1329
          %s1332 = sld [smem:[#allocation9 + $0x14]]
          %s1333 = sld [smem:[#allocation9 + $0x45]]
          %v1334 = vstv %s1332
          %v1335 = vmul.f32 %v321, %v1334
          %1337 = vrot.lane.b32.xlu0 %v1335, 96
          %v1338 = vpop.permute.xlu0 %1337
          %v1339 = vrot.slane %v1338, 1
          %v1340 = vsel %vm358, %v1338, %v1339
          %v1342 = vadd.f32 %v1331, %v1340
          %v1343 = vstv %s1333
          %v1344 = vmul.f32 %v325, %v1343
          %1346 = vrot.lane.b32.xlu0 %v1344, 96
          %v1347 = vpop.permute.xlu0 %1346
          %v1348 = vrot.slane %v1347, 1
          %v1349 = vsel %vm358, %v1347, %v1348
          %v1351 = vadd.f32 %v1342, %v1349
          %s1352 = sld [smem:[#allocation9 + $0x1b]]
          %s1353 = sld [smem:[#allocation9 + $0x4c]]
          %v1354 = vstv %s1352
          %v1355 = vmul.f32 %v394, %v1354
          %1357 = vrot.lane.b32.xlu0 %v1355, 80
          %v1358 = vpop.permute.xlu0 %1357
          %v1359 = vrot.slane %v1358, 7
          %v1360 = vsel %vm379, %v1359, %v1358
          %v1362 = vadd.f32 %v1351, %v1360
          %v1363 = vstv %s1353
          %v1364 = vmul.f32 %v405, %v1363
          %1366 = vrot.lane.b32.xlu0 %v1364, 80
          %v1367 = vpop.permute.xlu0 %1366
          %v1368 = vrot.slane %v1367, 7
          %v1369 = vsel %vm379, %v1368, %v1367
          %v1371 = vadd.f32 %v1362, %v1369
          %s1372 = sld [smem:[#allocation9 + $0x22]]
          %s1373 = sld [smem:[#allocation9 + $0x53]]
          %v1374 = vstv %s1372
          %v1375 = vmul.f32 %v394, %v1374
          %1377 = vrot.lane.b32.xlu0 %v1375, 64
          %v1378 = vpop.permute.xlu0 %1377
          %v1379 = vrot.slane %v1378, 7
          %v1380 = vsel %vm401, %v1379, %v1378
          %v1382 = vadd.f32 %v1371, %v1380
          %v1383 = vstv %s1373
          %v1384 = vmul.f32 %v405, %v1383
          %1386 = vrot.lane.b32.xlu0 %v1384, 64
          %v1387 = vpop.permute.xlu0 %1386
          %v1388 = vrot.slane %v1387, 7
          %v1389 = vsel %vm401, %v1388, %v1387
          %v1391 = vadd.f32 %v1382, %v1389
          %s1392 = sld [smem:[#allocation9 + $0x29]]
          %s1393 = sld [smem:[#allocation9 + $0x5a]]
          %v1394 = vstv %s1392
          %v1395 = vmul.f32 %v394, %v1394
          %1397 = vrot.lane.b32.xlu0 %v1395, 48
          %v1398 = vpop.permute.xlu0 %1397
          %v1399 = vrot.slane %v1398, 7
          %v1400 = vsel %vm423, %v1399, %v1398
          %v1402 = vadd.f32 %v1391, %v1400
          %v1403 = vstv %s1393
          %v1404 = vmul.f32 %v405, %v1403
          %1406 = vrot.lane.b32.xlu0 %v1404, 48
          %v1407 = vpop.permute.xlu0 %1406
          %v1408 = vrot.slane %v1407, 7
          %v1409 = vsel %vm423, %v1408, %v1407
          %v1411 = vadd.f32 %v1402, %v1409
          %s1412 = sld [smem:[#allocation9 + $0x30]]
          %s1413 = sld [smem:[#allocation9 + $0x61]]
          %v1414 = vstv %s1412
          %v1415 = vmul.f32 %v394, %v1414
          %1417 = vrot.lane.b32.xlu0 %v1415, 32
          %v1418 = vpop.permute.xlu0 %1417
          %v1419 = vrot.slane %v1418, 7
          %v1420 = vsel %vm444, %v1419, %v1418
          %v1422 = vadd.f32 %v1411, %v1420
          %v1423 = vstv %s1413
          %v1424 = vmul.f32 %v405, %v1423
          %1426 = vrot.lane.b32.xlu0 %v1424, 32
          %v1427 = vpop.permute.xlu0 %1426
          %v1428 = vrot.slane %v1427, 7
          %v1429 = vsel %vm444, %v1428, %v1427
          %v1431 = vadd.f32 %v1422, %v1429
          %v1432 = vadd.s32 %v317, 3
          %v1433 = vadd.s32 %v318, 3
          %vm1434 = vcmp.ge.s32.totalorder %v1432, 0
          %vm1435 = vcmp.ge.s32.totalorder %v1433, 0
          %vm1436 = vcmp.lt.s32.totalorder %v1432, 16
          %vm1437 = vcmp.lt.s32.totalorder %v1433, 16
          %vm1438 = vmand %vm1434, %vm1436
          %vm1439 = vmand %vm1435, %vm1437
          %v1441 = vlaneseq
          %v1442 = vshrl.u32 %v1441, 7
          %v1443 = vsub.s32 0, %v1442
          %v1444 = vrot.slane %v1431, %v1443
          %v1445 = vlaneseq
          %v1446 = vshrl.u32 %v1445, 7
          %v1447 = vsub.s32 1, %v1446
          %v1448 = vrot.slane %v1431, %v1447
          %v1449 = vlaneseq
          %v1450 = vshrl.u32 %v1449, 7
          %v1451 = vsub.s32 2, %v1450
          %v1452 = vrot.slane %v1431, %v1451
          %1453 = vrot.lane.b32.xlu0 %v1444, 45
          %v1454 = vpop.permute.xlu0 %1453
          %1455 = vrot.lane.b32.xlu0 %v1448, 45
          %v1456 = vpop.permute.xlu0 %1455
          %1457 = vrot.lane.b32.xlu0 %v1452, 45
          %v1458 = vpop.permute.xlu0 %1457
          %vm1459 = vcmask 367616
          %v1460 = vsel %vm1459, %v1454, %v1456
          %v1461 = vsel %vm1459, %v1456, %v1458
          %v1464 = vsel %vm1438, %v1460, 0.0
          %v1465 = vsel %vm1439, %v1461, 0.0
          %v1466 = vadd.f32 %v1302, %v1464
          %v1467 = vadd.f32 %v1303, %v1465
          %v1468 = vxor.u32 %v1466, 2147483648
          %v1469 = vxor.u32 %v1467, 2147483648
          %v1470 = vmul.f32 %v1468, 1.442695
          %v1471 = vpow.pop %v1470
          %v1472 = vmul.f32 %v1469, 1.442695
          %v1473 = vpow.pop %v1472
          %v1474 = vadd.f32 %v1471, 1.0
          %v1475 = vadd.f32 %v1473, 1.0
          %v1476 = vrcp.pop %v1474
          %v1477 = vmul.f32 1.0, %v1476
          %v1478 = vrcp.pop %v1475
          %v1479 = vmul.f32 1.0, %v1478
          %v1482 = vcombine.low %v1477, %v1479
          %v1484 = vunpack.c.l.s4 1966171168
          %v1485 = vunpack.c.0.s8 %v1484
          %v1486 = vlaneseq
          %v1487 = vshrl.u32 %v1486, 7
          %v1488 = vsub.s32 %v1485, %v1487
          %v1489 = vrot.slane %v1482, %v1488
          %v1491 = vunpack.c.l.s4 1966171168
          %v1492 = vunpack.c.0.s8 %v1491
          %v1493 = vlaneseq
          %v1494 = vshrl.u32 %v1493, 7
          %v1495 = vsub.s32 %v1492, %v1494
          %v1496 = vrot.slane %v1489, %v1495
          %1498 = vst.msk [vmem:[%s187] sm:$0x3] %vm240, %v1496
        $region44: #{spatial_attention.1} parent=27 // pred_fallthru
          _
        %s1499 = sand.u32 %s89, 1
        %s1500 = scalar_lea.sflag [#allocation7], %s1499
        %s1501 = sand.u32 %s89, 1
        %s1502 = smul.addr %s1501, 2
        %s1503 = scalar_lea.vmem [#allocation10], %s1502
        // Predicated region
        $region45: #{spatial_attention.1} parent=27 // pred_check
          %p1504 = pneg %p99
        $region46: #{spatial_attention.1} parent=27 // pred_check_branch
          %1506 = sbr.rel (%p1504) target = $region48
        $region47: #{spatial_attention.1} parent=27 // pred_region
          %s1508 = ssub.s32 32, 32
          %1509 = vsyncadd %s1500, %s1508
          %s1510 = smul.addr %s24, 2
          %s1511 = smul.addr %s1510, 16
          %s1512 = scalar_lea.hbm %s2, %s1511
          %s1514 = sshll.u32 %s1503, 4
          %s1515 = int_to_ptr.vmem [resolvable:$true] %s1514
          %1517 = dma.vmem_to_hbm [thread:$0]  %s1515, 32, %s1512, %s1500
        $region48: #{spatial_attention.1} parent=27 // pred_fallthru
          _
      $region28: #{spatial_attention.1} parent=5 // pred_fallthru
        _
      %p1518 = scmp.le.s32.totalorder 2, %s15
      // Predicated region
      $region49: #{spatial_attention.1} parent=5 // pred_check
        %p1519 = pneg %p1518
      $region50: #{spatial_attention.1} parent=5 // pred_check_branch
        %1521 = sbr.rel (%p1519) target = $region52
      $region51: #{spatial_attention.1} parent=5 // pred_region
        %s1522 = ssub.s32 %s15, 2
        // Predicated region
        $region53: #{spatial_attention.1} parent=51 // pred_check
          %p1523 = pneg %p105
        $region54: #{spatial_attention.1} parent=51 // pred_check_branch
          %1525 = sbr.rel (%p1523) target = $region56
        $region55: #{spatial_attention.1} parent=51 // pred_region
          %s1526 = sand.u32 %s90, 1
          %s1527 = scalar_lea.sflag [#allocation7], %s1526
          %s1528 = sand.u32 %s90, 1
          %s1529 = smul.addr %s1528, 2
          %s1530 = scalar_lea.vmem [#allocation10], %s1529
          %1531 = dma.done %s1527, 32
        $region56: #{spatial_attention.1} parent=51 // pred_fallthru
          _
      $region52: #{spatial_attention.1} parent=5 // pred_fallthru
        _
    $region6: #{spatial_attention.1} parent=1 // loop_footer
      %s19 = sadd.s32 1, %s15
    $region7: #{spatial_attention.1} parent=1 // loop_footer_branch
      %14 = sbr.rel target = $region3
    $region8: #{spatial_attention.1} parent=1 // loop_exit
      _
    %1532 = vsyncpa [#allocation6], 1
    %s1533 = scalar_lea.sflag [#allocation6], 1
    %1534 = vsyncpa %s1533, 1
    %1535 = vsyncpa [#allocation7], 1
    %s1536 = scalar_lea.sflag [#allocation7], 1
    %1537 = vsyncpa %s1536, 1
    %1538 = vsyncpa [#allocation8], 1
    %s1539 = scalar_lea.sflag [#allocation8], 1
    %1540 = vsyncpa %s1539, 1

</llo_original>
